<compile_context>
chip_gen: v5e
topology: v5e:2x2
jax: 0.10.0
libtpu: 0.0.40
codegen_flags: <defaults>
</compile_context>

<pallas_src>
import jax
import jax.numpy as jnp
from jax.experimental import pallas as pl
from jax.experimental.pallas import tpu as pltpu

# Layer sizes of mynet in gpnet2_1_3.
DIMS = [2, 80, 80, 80, 80, 1, 1]


def _mlp_kernel(x_ref,
                w1_ref, b1_ref,
                w2_ref, b2_ref,
                w3_ref, b3_ref,
                w4_ref, b4_ref,
                w5_ref, b5_ref,
                w6_ref,
                o_ref):
    # Lane-dense layout: batch on the last (lane) axis.
    #   x_ref      : (2,  T)
    #   w1_ref     : (80, 2)    b1_ref: (80, 1)
    #   w2..w4_ref : (80, 80)   b*_ref: (80, 1)
    #   w5_ref     : (80, 1)    b5_ref: (1, 1)   (PyTorch (1,80) weight stored as a column)
    #   w6_ref     : (1, 1)     (no bias)
    #   o_ref      : (1,  T)
    x = x_ref[...]

    # Layer 1 (K=2): two VPU broadcast multiply-adds instead of a nearly-empty MXU matmul.
    w1 = w1_ref[...]
    h = jnp.tanh(w1[:, 0:1] * x[0:1, :] + w1[:, 1:2] * x[1:2, :] + b1_ref[...])

    # Layers 2-4: 80x80 matmuls on the MXU; activations stay [80, T] (lane dense).
    h = jnp.tanh(jnp.dot(w2_ref[...], h, preferred_element_type=jnp.float32)
                 + b2_ref[...])
    h = jnp.tanh(jnp.dot(w3_ref[...], h, preferred_element_type=jnp.float32)
                 + b3_ref[...])
    h = jnp.tanh(jnp.dot(w4_ref[...], h, preferred_element_type=jnp.float32)
                 + b4_ref[...])

    # Layer 5 (80 -> 1): VPU multiply + sublane reduce, then sigmoid.
    z = jnp.sum(w5_ref[...] * h, axis=0, keepdims=True) + b5_ref[...]   # (1, T)
    s = 1.0 / (1.0 + jnp.exp(-z))

    # Layer 6 (1 -> 1, no bias): scalar scale; lane-dense (1, T) store.
    o_ref[...] = (w6_ref[...] * s).astype(o_ref.dtype)


def init_params(key):
    """PyTorch-Linear-like init: W is (d_out, d_in), b is (d_out,); last layer has no bias."""
    params = []
    for i in range(len(DIMS) - 1):
        d_in, d_out = DIMS[i], DIMS[i + 1]
        key, kw, kb = jax.random.split(key, 3)
        bound = 1.0 / jnp.sqrt(d_in)
        w = jax.random.uniform(kw, (d_out, d_in), jnp.float32, -bound, bound)
        if i < len(DIMS) - 2:          # final Linear(1, 1, bias=False)
            b = jax.random.uniform(kb, (d_out,), jnp.float32, -bound, bound)
        else:
            b = None
        params.append((w, b))
    return params


def gpnet2_1_3_forward(x_train, params, *, tile_n=1024):
    """Pallas forward for the x_train-only path (returns h = mynet(x_train)) as [N, 1]."""
    n, d_in = x_train.shape
    assert d_in == DIMS[0]

    # Lane-multiple batch tile; pad N in the wrapper (padded rows are sliced off below).
    tile_n = max(128, (tile_n // 128) * 128)
    n_pad = -(-n // tile_n) * tile_n

    # Batch on the lane axis: feed x as [2, n_pad], zero-padded tail.
    x_t = jnp.zeros((DIMS[0], n_pad), jnp.float32)
    x_t = x_t.at[:, :n].set(x_train.astype(jnp.float32).T)

    (w1, b1), (w2, b2), (w3, b3), (w4, b4), (w5, b5), (w6, _) = params
    kernel_args = [
        w1, b1.reshape(DIMS[1], 1),     # (80, 2),  (80, 1)
        w2, b2.reshape(DIMS[2], 1),     # (80, 80), (80, 1)
        w3, b3.reshape(DIMS[3], 1),
        w4, b4.reshape(DIMS[4], 1),
        w5.T, b5.reshape(1, 1),         # (80, 1),  (1, 1)
        w6,                             # (1, 1)
    ]

    # x / out tiled over the (lane-axis) batch; tiny weights passed whole every step.
    in_specs = [pl.BlockSpec((DIMS[0], tile_n), lambda i: (0, i))]
    for a in kernel_args:
        in_specs.append(pl.BlockSpec(a.shape, lambda i: (0, 0)))
    out_spec = pl.BlockSpec((1, tile_n), lambda i: (0, i))

    out = pl.pallas_call(
        _mlp_kernel,
        out_shape=jax.ShapeDtypeStruct((1, n_pad), jnp.float32),
        grid_spec=pltpu.PrefetchScalarGridSpec(
            num_scalar_prefetch=0,
            grid=(n_pad // tile_n,),
            in_specs=in_specs,
            out_specs=out_spec,
        ),
        compiler_params=pltpu.CompilerParams(
            dimension_semantics=("parallel",)),
    )(x_t, *kernel_args)

    return out[:, :n].T                 # (n, 1)


def _reference(x, params):
    h = x
    for i, (w, b) in enumerate(params):
        h = jnp.dot(h, w.T, precision=jax.lax.Precision.HIGHEST)
        if b is not None:
            h = h + b
        if i < 4:
            h = jnp.tanh(h)
        elif i == 4:
            h = jax.nn.sigmoid(h)
    return h


if __name__ == "__main__":
    key = jax.random.PRNGKey(0)
    kx, kp = jax.random.split(key)

    n = 300                              # not a tile multiple: exercises pad + slice path
    x_train = jax.random.normal(kx, (n, 2), jnp.float32)
    params = init_params(kp)

    out = gpnet2_1_3_forward(x_train, params)
    out = jax.block_until_ready(out)

    ref = _reference(x_train, params)
    assert out.shape == (n, 1)
    assert jnp.allclose(out, ref, atol=1e-4, rtol=1e-4), "mismatch vs JAX reference"

    print("KERNEL_OK")
</pallas_src>

<mosaic_0001>
module attributes {stable_mosaic.version = 11 : i64} {
  func.func @_mlp_kernel(%arg0: i32, %arg1: memref<2x1024xf32, #tpu.memory_space<vmem>>, %arg2: memref<80x2xf32, #tpu.memory_space<vmem>>, %arg3: memref<80x1xf32, #tpu.memory_space<vmem>>, %arg4: memref<80x80xf32, #tpu.memory_space<vmem>>, %arg5: memref<80x1xf32, #tpu.memory_space<vmem>>, %arg6: memref<80x80xf32, #tpu.memory_space<vmem>>, %arg7: memref<80x1xf32, #tpu.memory_space<vmem>>, %arg8: memref<80x80xf32, #tpu.memory_space<vmem>>, %arg9: memref<80x1xf32, #tpu.memory_space<vmem>>, %arg10: memref<80x1xf32, #tpu.memory_space<vmem>>, %arg11: memref<1x1xf32, #tpu.memory_space<vmem>>, %arg12: memref<1x1xf32, #tpu.memory_space<vmem>>, %arg13: memref<1x1024xf32, #tpu.memory_space<vmem>>) attributes {dimension_semantics = [#tpu.dimension_semantics<parallel>], iteration_bounds = array<i64: 1>, scalar_prefetch = 0 : i64, scratch_operands = 0 : i64, tpu.core_type = #tpu.core_type<tc>, window_params = [{transform_indices = @transform_0, window_bounds = array<i64: 2, 1024>}, {pipeline_mode = #tpu.pipeline_mode<synchronous>, transform_indices = @transform_1, window_bounds = array<i64: 80, 2>}, {pipeline_mode = #tpu.pipeline_mode<synchronous>, transform_indices = @transform_2, window_bounds = array<i64: 80, 1>}, {pipeline_mode = #tpu.pipeline_mode<synchronous>, transform_indices = @transform_3, window_bounds = array<i64: 80, 80>}, {pipeline_mode = #tpu.pipeline_mode<synchronous>, transform_indices = @transform_4, window_bounds = array<i64: 80, 1>}, {pipeline_mode = #tpu.pipeline_mode<synchronous>, transform_indices = @transform_5, window_bounds = array<i64: 80, 80>}, {pipeline_mode = #tpu.pipeline_mode<synchronous>, transform_indices = @transform_6, window_bounds = array<i64: 80, 1>}, {pipeline_mode = #tpu.pipeline_mode<synchronous>, transform_indices = @transform_7, window_bounds = array<i64: 80, 80>}, {pipeline_mode = #tpu.pipeline_mode<synchronous>, transform_indices = @transform_8, window_bounds = array<i64: 80, 1>}, {pipeline_mode = #tpu.pipeline_mode<synchronous>, transform_indices = @transform_9, window_bounds = array<i64: 80, 1>}, {pipeline_mode = #tpu.pipeline_mode<synchronous>, transform_indices = @transform_10, window_bounds = array<i64: 1, 1>}, {pipeline_mode = #tpu.pipeline_mode<synchronous>, transform_indices = @transform_11, window_bounds = array<i64: 1, 1>}, {transform_indices = @transform_12, window_bounds = array<i64: 1, 1024>}]} {
    %c0 = arith.constant 0 : index
    %c0_0 = arith.constant 0 : index
    %0 = vector.load %arg1[%c0, %c0_0] : memref<2x1024xf32, #tpu.memory_space<vmem>>, vector<2x1024xf32>
    %c0_1 = arith.constant 0 : index
    %c0_2 = arith.constant 0 : index
    %1 = vector.load %arg2[%c0_1, %c0_2] : memref<80x2xf32, #tpu.memory_space<vmem>>, vector<80x2xf32>
    %2 = vector.extract_strided_slice %1 {offsets = [0, 0], sizes = [80, 1], strides = [1, 1]} : vector<80x2xf32> to vector<80x1xf32>
    %3 = vector.extract_strided_slice %0 {offsets = [0, 0], sizes = [1, 1024], strides = [1, 1]} : vector<2x1024xf32> to vector<1x1024xf32>
    %4 = vector.broadcast %2 : vector<80x1xf32> to vector<80x1024xf32>
    %5 = vector.broadcast %3 : vector<1x1024xf32> to vector<80x1024xf32>
    %6 = arith.mulf %4, %5 : vector<80x1024xf32>
    %7 = vector.extract_strided_slice %1 {offsets = [0, 1], sizes = [80, 1], strides = [1, 1]} : vector<80x2xf32> to vector<80x1xf32>
    %8 = vector.extract_strided_slice %0 {offsets = [1, 0], sizes = [1, 1024], strides = [1, 1]} : vector<2x1024xf32> to vector<1x1024xf32>
    %9 = vector.broadcast %7 : vector<80x1xf32> to vector<80x1024xf32>
    %10 = vector.broadcast %8 : vector<1x1024xf32> to vector<80x1024xf32>
    %11 = arith.mulf %9, %10 : vector<80x1024xf32>
    %12 = arith.addf %6, %11 : vector<80x1024xf32>
    %c0_3 = arith.constant 0 : index
    %c0_4 = arith.constant 0 : index
    %13 = vector.load %arg3[%c0_3, %c0_4] : memref<80x1xf32, #tpu.memory_space<vmem>>, vector<80x1xf32>
    %14 = vector.broadcast %13 : vector<80x1xf32> to vector<80x1024xf32>
    %15 = arith.addf %12, %14 : vector<80x1024xf32>
    %16 = math.tanh %15 : vector<80x1024xf32>
    %c0_5 = arith.constant 0 : index
    %c0_6 = arith.constant 0 : index
    %17 = vector.load %arg4[%c0_5, %c0_6] : memref<80x80xf32, #tpu.memory_space<vmem>>, vector<80x80xf32>
    %cst = arith.constant dense<0.000000e+00> : vector<80x1024xf32>
    %18 = tpu.matmul %17, %16, %cst {dimension_numbers = #tpu.dot_dimension_numbers<[1], [0], [0], [1], [0, 0, 1, 1], [], []>} : vector<80x80xf32>, vector<80x1024xf32>, vector<80x1024xf32> -> vector<80x1024xf32>
    %c0_7 = arith.constant 0 : index
    %c0_8 = arith.constant 0 : index
    %19 = vector.load %arg5[%c0_7, %c0_8] : memref<80x1xf32, #tpu.memory_space<vmem>>, vector<80x1xf32>
    %20 = vector.broadcast %19 : vector<80x1xf32> to vector<80x1024xf32>
    %21 = arith.addf %18, %20 : vector<80x1024xf32>
    %22 = math.tanh %21 : vector<80x1024xf32>
    %c0_9 = arith.constant 0 : index
    %c0_10 = arith.constant 0 : index
    %23 = vector.load %arg6[%c0_9, %c0_10] : memref<80x80xf32, #tpu.memory_space<vmem>>, vector<80x80xf32>
    %cst_11 = arith.constant dense<0.000000e+00> : vector<80x1024xf32>
    %24 = tpu.matmul %23, %22, %cst_11 {dimension_numbers = #tpu.dot_dimension_numbers<[1], [0], [0], [1], [0, 0, 1, 1], [], []>} : vector<80x80xf32>, vector<80x1024xf32>, vector<80x1024xf32> -> vector<80x1024xf32>
    %c0_12 = arith.constant 0 : index
    %c0_13 = arith.constant 0 : index
    %25 = vector.load %arg7[%c0_12, %c0_13] : memref<80x1xf32, #tpu.memory_space<vmem>>, vector<80x1xf32>
    %26 = vector.broadcast %25 : vector<80x1xf32> to vector<80x1024xf32>
    %27 = arith.addf %24, %26 : vector<80x1024xf32>
    %28 = math.tanh %27 : vector<80x1024xf32>
    %c0_14 = arith.constant 0 : index
    %c0_15 = arith.constant 0 : index
    %29 = vector.load %arg8[%c0_14, %c0_15] : memref<80x80xf32, #tpu.memory_space<vmem>>, vector<80x80xf32>
    %cst_16 = arith.constant dense<0.000000e+00> : vector<80x1024xf32>
    %30 = tpu.matmul %29, %28, %cst_16 {dimension_numbers = #tpu.dot_dimension_numbers<[1], [0], [0], [1], [0, 0, 1, 1], [], []>} : vector<80x80xf32>, vector<80x1024xf32>, vector<80x1024xf32> -> vector<80x1024xf32>
    %c0_17 = arith.constant 0 : index
    %c0_18 = arith.constant 0 : index
    %31 = vector.load %arg9[%c0_17, %c0_18] : memref<80x1xf32, #tpu.memory_space<vmem>>, vector<80x1xf32>
    %32 = vector.broadcast %31 : vector<80x1xf32> to vector<80x1024xf32>
    %33 = arith.addf %30, %32 : vector<80x1024xf32>
    %34 = math.tanh %33 : vector<80x1024xf32>
    %c0_19 = arith.constant 0 : index
    %c0_20 = arith.constant 0 : index
    %35 = vector.load %arg10[%c0_19, %c0_20] : memref<80x1xf32, #tpu.memory_space<vmem>>, vector<80x1xf32>
    %36 = vector.broadcast %35 : vector<80x1xf32> to vector<80x1024xf32>
    %37 = arith.mulf %36, %34 : vector<80x1024xf32>
    %cst_21 = arith.constant dense<0.000000e+00> : vector<1024xf32>
    %38 = vector.multi_reduction <add>, %37, %cst_21 [0] : vector<80x1024xf32> to vector<1024xf32>
    %39 = vector.shape_cast %38 : vector<1024xf32> to vector<1x1024xf32>
    %c0_22 = arith.constant 0 : index
    %c0_23 = arith.constant 0 : index
    %40 = vector.load %arg11[%c0_22, %c0_23] : memref<1x1xf32, #tpu.memory_space<vmem>>, vector<1x1xf32>
    %41 = vector.broadcast %40 : vector<1x1xf32> to vector<1x1024xf32>
    %42 = arith.addf %39, %41 : vector<1x1024xf32>
    %cst_24 = arith.constant 0.000000e+00 : f32
    %43 = vector.broadcast %cst_24 : f32 to vector<1x1024xf32>
    %44 = arith.subf %43, %42 : vector<1x1024xf32>
    %45 = math.exp %44 : vector<1x1024xf32>
    %cst_25 = arith.constant 1.000000e+00 : f32
    %46 = vector.broadcast %cst_25 : f32 to vector<1x1024xf32>
    %47 = arith.addf %46, %45 : vector<1x1024xf32>
    %cst_26 = arith.constant 1.000000e+00 : f32
    %48 = vector.broadcast %cst_26 : f32 to vector<1x1024xf32>
    %49 = arith.divf %48, %47 : vector<1x1024xf32>
    %c0_27 = arith.constant 0 : index
    %c0_28 = arith.constant 0 : index
    %50 = vector.load %arg12[%c0_27, %c0_28] : memref<1x1xf32, #tpu.memory_space<vmem>>, vector<1x1xf32>
    %51 = vector.broadcast %50 : vector<1x1xf32> to vector<1x1024xf32>
    %52 = arith.mulf %51, %49 : vector<1x1024xf32>
    %c0_29 = arith.constant 0 : index
    %c0_30 = arith.constant 0 : index
    %53 = vector.load %arg13[%c0_29, %c0_30] : memref<1x1024xf32, #tpu.memory_space<vmem>>, vector<1x1024xf32>
    tpu.vector_store %arg13[%c0_29, %c0_30], %52 {strides = array<i32>} : memref<1x1024xf32, #tpu.memory_space<vmem>>, vector<1x1024xf32>,
    return
  }
  func.func @transform_0(%arg0: i32) -> (i32, i32) {
    %c0_i32 = arith.constant 0 : i32
    %c0_i32_0 = arith.constant 0 : i32
    return %c0_i32, %arg0 : i32, i32
  }
  func.func @transform_1(%arg0: i32) -> (i32, i32) {
    %c0_i32 = arith.constant 0 : i32
    %c0_i32_0 = arith.constant 0 : i32
    %c0_i32_1 = arith.constant 0 : i32
    return %c0_i32, %c0_i32_0 : i32, i32
  }
  func.func @transform_2(%arg0: i32) -> (i32, i32) {
    %c0_i32 = arith.constant 0 : i32
    %c0_i32_0 = arith.constant 0 : i32
    %c0_i32_1 = arith.constant 0 : i32
    return %c0_i32, %c0_i32_0 : i32, i32
  }
  func.func @transform_3(%arg0: i32) -> (i32, i32) {
    %c0_i32 = arith.constant 0 : i32
    %c0_i32_0 = arith.constant 0 : i32
    %c0_i32_1 = arith.constant 0 : i32
    return %c0_i32, %c0_i32_0 : i32, i32
  }
  func.func @transform_4(%arg0: i32) -> (i32, i32) {
    %c0_i32 = arith.constant 0 : i32
    %c0_i32_0 = arith.constant 0 : i32
    %c0_i32_1 = arith.constant 0 : i32
    return %c0_i32, %c0_i32_0 : i32, i32
  }
  func.func @transform_5(%arg0: i32) -> (i32, i32) {
    %c0_i32 = arith.constant 0 : i32
    %c0_i32_0 = arith.constant 0 : i32
    %c0_i32_1 = arith.constant 0 : i32
    return %c0_i32, %c0_i32_0 : i32, i32
  }
  func.func @transform_6(%arg0: i32) -> (i32, i32) {
    %c0_i32 = arith.constant 0 : i32
    %c0_i32_0 = arith.constant 0 : i32
    %c0_i32_1 = arith.constant 0 : i32
    return %c0_i32, %c0_i32_0 : i32, i32
  }
  func.func @transform_7(%arg0: i32) -> (i32, i32) {
    %c0_i32 = arith.constant 0 : i32
    %c0_i32_0 = arith.constant 0 : i32
    %c0_i32_1 = arith.constant 0 : i32
    return %c0_i32, %c0_i32_0 : i32, i32
  }
  func.func @transform_8(%arg0: i32) -> (i32, i32) {
    %c0_i32 = arith.constant 0 : i32
    %c0_i32_0 = arith.constant 0 : i32
    %c0_i32_1 = arith.constant 0 : i32
    return %c0_i32, %c0_i32_0 : i32, i32
  }
  func.func @transform_9(%arg0: i32) -> (i32, i32) {
    %c0_i32 = arith.constant 0 : i32
    %c0_i32_0 = arith.constant 0 : i32
    %c0_i32_1 = arith.constant 0 : i32
    return %c0_i32, %c0_i32_0 : i32, i32
  }
  func.func @transform_10(%arg0: i32) -> (i32, i32) {
    %c0_i32 = arith.constant 0 : i32
    %c0_i32_0 = arith.constant 0 : i32
    %c0_i32_1 = arith.constant 0 : i32
    return %c0_i32, %c0_i32_0 : i32, i32
  }
  func.func @transform_11(%arg0: i32) -> (i32, i32) {
    %c0_i32 = arith.constant 0 : i32
    %c0_i32_0 = arith.constant 0 : i32
    %c0_i32_1 = arith.constant 0 : i32
    return %c0_i32, %c0_i32_0 : i32, i32
  }
  func.func @transform_12(%arg0: i32) -> (i32, i32) {
    %c0_i32 = arith.constant 0 : i32
    %c0_i32_0 = arith.constant 0 : i32
    return %c0_i32, %arg0 : i32, i32
  }
}

</mosaic_0001>

<llo_original>
// kernel: tpu_custom_call.1
$region0: #{tpu_custom_call.1}
  #allocation0 [shape = 'u32[]', space=smem, size = 0x4, offset = 0x4, fixed_abs, tag = 'smem constant byte address 0x4 - core index']
  #allocation1 [shape = 'u32[72,128]{1,0:T(1,128)}', space=vmem, size = 0x9000, scoped, tag = 'internal scratch']
  #allocation2 [shape = 'f32[1,1]{1,0:T(1,128)S(1)}', space=vmem, size = 0x200, scoped, tag = 'scoped memory for tpu_custom_call.1']
  #allocation3 [shape = 'f32[1,1]{1,0:T(1,128)S(1)}', space=vmem, size = 0x200, scoped, tag = 'scoped memory for tpu_custom_call.1']
  %s0 = inlined_call_operand.vmem [shape: f32[2,1024], index: 0, kind: input, shape index: {}]
  %s1 = inlined_call_operand.vmem [shape: f32[80,2], index: 1, kind: input, shape index: {}]
  %s2 = inlined_call_operand.vmem [shape: f32[80,1], index: 2, kind: input, shape index: {}]
  %s3 = inlined_call_operand.vmem [shape: f32[80,80], index: 3, kind: input, shape index: {}]
  %s4 = inlined_call_operand.vmem [shape: f32[80,1], index: 4, kind: input, shape index: {}]
  %s5 = inlined_call_operand.vmem [shape: f32[80,80], index: 5, kind: input, shape index: {}]
  %s6 = inlined_call_operand.vmem [shape: f32[80,1], index: 6, kind: input, shape index: {}]
  %s7 = inlined_call_operand.vmem [shape: f32[80,80], index: 7, kind: input, shape index: {}]
  %s8 = inlined_call_operand.vmem [shape: f32[80,1], index: 8, kind: input, shape index: {}]
  %s9 = inlined_call_operand.vmem [shape: f32[80,1], index: 9, kind: input, shape index: {}]
  %s10 = inlined_call_operand.<no memory space> [shape: f32[1,1], index: 10, kind: input, shape index: {}]
  %s11 = inlined_call_operand.<no memory space> [shape: f32[1,1], index: 11, kind: input, shape index: {}]
  %s12 = inlined_call_operand.hbm [shape: f32[1,1024], index: 12, kind: output, shape index: {}]
  %s13 = sld [smem:[#allocation0]]
  $region58: #{tpu_custom_call.1} parent=0
    _
  %s15 = ssub.s32 1, %s13
  %s16 = scalar_select 0, %s15, %s13
  %v17 = vstv %s10
  %18 = vst [vmem:[#allocation2] sm:$0x1] %v17
  %v19 = vstv %s11
  %20 = vst [vmem:[#allocation3] sm:$0x1] %v19
  $region1: #{tpu_custom_call.1} parent=0
    #allocation4 [shape = 'u8[4096]{0}', space=vmem, size = 0x1000, scoped, tag = 'output window, operand 0, single buffered']
    #allocation5 [shape = 's32[1]{0}', space=sflag, size = 0x4, scoped, tag = 'scoped memory for tpu_custom_call.1']
    %21 = vsyncpa [#allocation5], 0
    // Predicated region
    $region2: #{tpu_custom_call.1} parent=1 // pred_check
      _
    $region3: #{tpu_custom_call.1} parent=1 // pred_check_branch
      %23 = sbr.rel (0) target = $region5
    $region4: #{tpu_custom_call.1} parent=1 // pred_region
      _
    $region5: #{tpu_custom_call.1} parent=1 // pred_fallthru
      _
    // Predicated region
    $region6: #{tpu_custom_call.1} parent=1 // pred_check
      _
    $region7: #{tpu_custom_call.1} parent=1 // pred_check_branch
      %25 = sbr.rel (0) target = $region9
    $region8: #{tpu_custom_call.1} parent=1 // pred_region
      _
    $region9: #{tpu_custom_call.1} parent=1 // pred_fallthru
      _
    // Predicated region
    $region10: #{tpu_custom_call.1} parent=1 // pred_check
      _
    $region11: #{tpu_custom_call.1} parent=1 // pred_check_branch
      %27 = sbr.rel (0) target = $region13
    $region12: #{tpu_custom_call.1} parent=1 // pred_region
      _
    $region13: #{tpu_custom_call.1} parent=1 // pred_fallthru
      _
    // Predicated region
    $region14: #{tpu_custom_call.1} parent=1 // pred_check
      _
    $region15: #{tpu_custom_call.1} parent=1 // pred_check_branch
      %29 = sbr.rel (0) target = $region17
    $region16: #{tpu_custom_call.1} parent=1 // pred_region
      _
    $region17: #{tpu_custom_call.1} parent=1 // pred_fallthru
      _
    // Predicated region
    $region18: #{tpu_custom_call.1} parent=1 // pred_check
      _
    $region19: #{tpu_custom_call.1} parent=1 // pred_check_branch
      %31 = sbr.rel (0) target = $region21
    $region20: #{tpu_custom_call.1} parent=1 // pred_region
      _
    $region21: #{tpu_custom_call.1} parent=1 // pred_fallthru
      _
    // Predicated region
    $region22: #{tpu_custom_call.1} parent=1 // pred_check
      _
    $region23: #{tpu_custom_call.1} parent=1 // pred_check_branch
      %33 = sbr.rel (0) target = $region25
    $region24: #{tpu_custom_call.1} parent=1 // pred_region
      _
    $region25: #{tpu_custom_call.1} parent=1 // pred_fallthru
      _
    // Predicated region
    $region26: #{tpu_custom_call.1} parent=1 // pred_check
      _
    $region27: #{tpu_custom_call.1} parent=1 // pred_check_branch
      %35 = sbr.rel (0) target = $region29
    $region28: #{tpu_custom_call.1} parent=1 // pred_region
      _
    $region29: #{tpu_custom_call.1} parent=1 // pred_fallthru
      _
    // Predicated region
    $region30: #{tpu_custom_call.1} parent=1 // pred_check
      _
    $region31: #{tpu_custom_call.1} parent=1 // pred_check_branch
      %37 = sbr.rel (0) target = $region33
    $region32: #{tpu_custom_call.1} parent=1 // pred_region
      _
    $region33: #{tpu_custom_call.1} parent=1 // pred_fallthru
      _
    // Predicated region
    $region34: #{tpu_custom_call.1} parent=1 // pred_check
      _
    $region35: #{tpu_custom_call.1} parent=1 // pred_check_branch
      %39 = sbr.rel (0) target = $region37
    $region36: #{tpu_custom_call.1} parent=1 // pred_region
      _
    $region37: #{tpu_custom_call.1} parent=1 // pred_fallthru
      _
    // Predicated region
    $region38: #{tpu_custom_call.1} parent=1 // pred_check
      _
    $region39: #{tpu_custom_call.1} parent=1 // pred_check_branch
      %41 = sbr.rel (0) target = $region41
    $region40: #{tpu_custom_call.1} parent=1 // pred_region
      _
    $region41: #{tpu_custom_call.1} parent=1 // pred_fallthru
      _
    // Predicated region
    $region42: #{tpu_custom_call.1} parent=1 // pred_check
      _
    $region43: #{tpu_custom_call.1} parent=1 // pred_check_branch
      %43 = sbr.rel (0) target = $region45
    $region44: #{tpu_custom_call.1} parent=1 // pred_region
      _
    $region45: #{tpu_custom_call.1} parent=1 // pred_fallthru
      _
    // Predicated region
    $region46: #{tpu_custom_call.1} parent=1 // pred_check
      _
    $region47: #{tpu_custom_call.1} parent=1 // pred_check_branch
      %45 = sbr.rel (0) target = $region49
    $region48: #{tpu_custom_call.1} parent=1 // pred_region
      _
    $region49: #{tpu_custom_call.1} parent=1 // pred_fallthru
      _
    %v46 = vld [vmem:[%s0] sm:$0xff]
    %v47 = vld [vmem:[%s0 + $0x8] sm:$0xff]
    %v48 = vld [vmem:[%s1] sm:$0xff]
    %v49 = vld [vmem:[%s1 + $0x8] sm:$0xff]
    %v50 = vld [vmem:[%s1 + $0x10] sm:$0xff]
    %v51 = vld [vmem:[%s1 + $0x18] sm:$0xff]
    %v52 = vld [vmem:[%s1 + $0x20] sm:$0xff]
    %v53 = vld [vmem:[%s1 + $0x28] sm:$0xff]
    %v54 = vld [vmem:[%s1 + $0x30] sm:$0xff]
    %v55 = vld [vmem:[%s1 + $0x38] sm:$0xff]
    %v56 = vld [vmem:[%s1 + $0x40] sm:$0xff]
    %v57 = vld [vmem:[%s1 + $0x48] sm:$0xff]
    %59 = vset.pattern.permute.xlu0 0
    %60 = vperm.xlu0 %59, %v48
    %v61 = vpop.permute.xlu0 %60
    %64 = vset.pattern.permute.xlu0 0
    %65 = vperm.xlu0 %64, %v49
    %v66 = vpop.permute.xlu0 %65
    %69 = vset.pattern.permute.xlu0 0
    %70 = vperm.xlu0 %69, %v50
    %v71 = vpop.permute.xlu0 %70
    %74 = vset.pattern.permute.xlu0 0
    %75 = vperm.xlu0 %74, %v51
    %v76 = vpop.permute.xlu0 %75
    %79 = vset.pattern.permute.xlu0 0
    %80 = vperm.xlu0 %79, %v52
    %v81 = vpop.permute.xlu0 %80
    %84 = vset.pattern.permute.xlu0 0
    %85 = vperm.xlu0 %84, %v53
    %v86 = vpop.permute.xlu0 %85
    %89 = vset.pattern.permute.xlu0 0
    %90 = vperm.xlu0 %89, %v54
    %v91 = vpop.permute.xlu0 %90
    %94 = vset.pattern.permute.xlu0 0
    %95 = vperm.xlu0 %94, %v55
    %v96 = vpop.permute.xlu0 %95
    %99 = vset.pattern.permute.xlu0 0
    %100 = vperm.xlu0 %99, %v56
    %v101 = vpop.permute.xlu0 %100
    %104 = vset.pattern.permute.xlu0 0
    %105 = vperm.xlu0 %104, %v57
    %v106 = vpop.permute.xlu0 %105
    %v110 = vperm.slane %v46, 0
    %v111 = vperm.slane %v46, 2
    %v112 = vperm.slane %v46, 4
    %v113 = vperm.slane %v46, 6
    %v114 = vperm.slane %v47, 0
    %v115 = vperm.slane %v47, 2
    %v116 = vperm.slane %v47, 4
    %v117 = vperm.slane %v47, 6
    %v126 = vperm.slane %v110, 0
    %v127 = vperm.slane %v111, 0
    %v128 = vperm.slane %v112, 0
    %v129 = vperm.slane %v113, 0
    %v130 = vperm.slane %v114, 0
    %v131 = vperm.slane %v115, 0
    %v132 = vperm.slane %v116, 0
    %v133 = vperm.slane %v117, 0
    %v134 = vmul.f32 %v61, %v126
    %v135 = vmul.f32 %v61, %v127
    %v136 = vmul.f32 %v61, %v128
    %v137 = vmul.f32 %v61, %v129
    %v138 = vmul.f32 %v61, %v130
    %v139 = vmul.f32 %v61, %v131
    %v140 = vmul.f32 %v61, %v132
    %v141 = vmul.f32 %v61, %v133
    %v142 = vmul.f32 %v66, %v126
    %v143 = vmul.f32 %v66, %v127
    %v144 = vmul.f32 %v66, %v128
    %v145 = vmul.f32 %v66, %v129
    %v146 = vmul.f32 %v66, %v130
    %v147 = vmul.f32 %v66, %v131
    %v148 = vmul.f32 %v66, %v132
    %v149 = vmul.f32 %v66, %v133
    %v150 = vmul.f32 %v71, %v126
    %v151 = vmul.f32 %v71, %v127
    %v152 = vmul.f32 %v71, %v128
    %v153 = vmul.f32 %v71, %v129
    %v154 = vmul.f32 %v71, %v130
    %v155 = vmul.f32 %v71, %v131
    %v156 = vmul.f32 %v71, %v132
    %v157 = vmul.f32 %v71, %v133
    %v158 = vmul.f32 %v76, %v126
    %v159 = vmul.f32 %v76, %v127
    %v160 = vmul.f32 %v76, %v128
    %v161 = vmul.f32 %v76, %v129
    %v162 = vmul.f32 %v76, %v130
    %v163 = vmul.f32 %v76, %v131
    %v164 = vmul.f32 %v76, %v132
    %v165 = vmul.f32 %v76, %v133
    %v166 = vmul.f32 %v81, %v126
    %v167 = vmul.f32 %v81, %v127
    %v168 = vmul.f32 %v81, %v128
    %v169 = vmul.f32 %v81, %v129
    %v170 = vmul.f32 %v81, %v130
    %v171 = vmul.f32 %v81, %v131
    %v172 = vmul.f32 %v81, %v132
    %v173 = vmul.f32 %v81, %v133
    %v174 = vmul.f32 %v86, %v126
    %v175 = vmul.f32 %v86, %v127
    %v176 = vmul.f32 %v86, %v128
    %v177 = vmul.f32 %v86, %v129
    %v178 = vmul.f32 %v86, %v130
    %v179 = vmul.f32 %v86, %v131
    %v180 = vmul.f32 %v86, %v132
    %v181 = vmul.f32 %v86, %v133
    %v182 = vmul.f32 %v91, %v126
    %v183 = vmul.f32 %v91, %v127
    %v184 = vmul.f32 %v91, %v128
    %v185 = vmul.f32 %v91, %v129
    %v186 = vmul.f32 %v91, %v130
    %v187 = vmul.f32 %v91, %v131
    %v188 = vmul.f32 %v91, %v132
    %v189 = vmul.f32 %v91, %v133
    %v190 = vmul.f32 %v96, %v126
    %v191 = vmul.f32 %v96, %v127
    %v192 = vmul.f32 %v96, %v128
    %v193 = vmul.f32 %v96, %v129
    %v194 = vmul.f32 %v96, %v130
    %v195 = vmul.f32 %v96, %v131
    %v196 = vmul.f32 %v96, %v132
    %v197 = vmul.f32 %v96, %v133
    %v198 = vmul.f32 %v101, %v126
    %v199 = vmul.f32 %v101, %v127
    %v200 = vmul.f32 %v101, %v128
    %v201 = vmul.f32 %v101, %v129
    %v202 = vmul.f32 %v101, %v130
    %v203 = vmul.f32 %v101, %v131
    %v204 = vmul.f32 %v101, %v132
    %v205 = vmul.f32 %v101, %v133
    %v206 = vmul.f32 %v106, %v126
    %v207 = vmul.f32 %v106, %v127
    %v208 = vmul.f32 %v106, %v128
    %v209 = vmul.f32 %v106, %v129
    %v210 = vmul.f32 %v106, %v130
    %v211 = vmul.f32 %v106, %v131
    %v212 = vmul.f32 %v106, %v132
    %v213 = vmul.f32 %v106, %v133
    %214 = vset.pattern.permute.xlu0 1
    %215 = vperm.xlu0 %214, %v48
    %v216 = vpop.permute.xlu0 %215
    %218 = vset.pattern.permute.xlu0 1
    %219 = vperm.xlu0 %218, %v49
    %v220 = vpop.permute.xlu0 %219
    %222 = vset.pattern.permute.xlu0 1
    %223 = vperm.xlu0 %222, %v50
    %v224 = vpop.permute.xlu0 %223
    %226 = vset.pattern.permute.xlu0 1
    %227 = vperm.xlu0 %226, %v51
    %v228 = vpop.permute.xlu0 %227
    %230 = vset.pattern.permute.xlu0 1
    %231 = vperm.xlu0 %230, %v52
    %v232 = vpop.permute.xlu0 %231
    %234 = vset.pattern.permute.xlu0 1
    %235 = vperm.xlu0 %234, %v53
    %v236 = vpop.permute.xlu0 %235
    %238 = vset.pattern.permute.xlu0 1
    %239 = vperm.xlu0 %238, %v54
    %v240 = vpop.permute.xlu0 %239
    %242 = vset.pattern.permute.xlu0 1
    %243 = vperm.xlu0 %242, %v55
    %v244 = vpop.permute.xlu0 %243
    %246 = vset.pattern.permute.xlu0 1
    %247 = vperm.xlu0 %246, %v56
    %v248 = vpop.permute.xlu0 %247
    %250 = vset.pattern.permute.xlu0 1
    %251 = vperm.xlu0 %250, %v57
    %v252 = vpop.permute.xlu0 %251
    %v254 = vperm.slane %v46, 1
    %v255 = vperm.slane %v46, 3
    %v256 = vperm.slane %v46, 5
    %v257 = vperm.slane %v46, 7
    %v258 = vperm.slane %v47, 1
    %v259 = vperm.slane %v47, 3
    %v260 = vperm.slane %v47, 5
    %v261 = vperm.slane %v47, 7
    %v270 = vperm.slane %v254, 1
    %v271 = vperm.slane %v255, 1
    %v272 = vperm.slane %v256, 1
    %v273 = vperm.slane %v257, 1
    %v274 = vperm.slane %v258, 1
    %v275 = vperm.slane %v259, 1
    %v276 = vperm.slane %v260, 1
    %v277 = vperm.slane %v261, 1
    %v278 = vmul.f32 %v216, %v270
    %v279 = vmul.f32 %v216, %v271
    %v280 = vmul.f32 %v216, %v272
    %v281 = vmul.f32 %v216, %v273
    %v282 = vmul.f32 %v216, %v274
    %v283 = vmul.f32 %v216, %v275
    %v284 = vmul.f32 %v216, %v276
    %v285 = vmul.f32 %v216, %v277
    %v286 = vmul.f32 %v220, %v270
    %v287 = vmul.f32 %v220, %v271
    %v288 = vmul.f32 %v220, %v272
    %v289 = vmul.f32 %v220, %v273
    %v290 = vmul.f32 %v220, %v274
    %v291 = vmul.f32 %v220, %v275
    %v292 = vmul.f32 %v220, %v276
    %v293 = vmul.f32 %v220, %v277
    %v294 = vmul.f32 %v224, %v270
    %v295 = vmul.f32 %v224, %v271
    %v296 = vmul.f32 %v224, %v272
    %v297 = vmul.f32 %v224, %v273
    %v298 = vmul.f32 %v224, %v274
    %v299 = vmul.f32 %v224, %v275
    %v300 = vmul.f32 %v224, %v276
    %v301 = vmul.f32 %v224, %v277
    %v302 = vmul.f32 %v228, %v270
    %v303 = vmul.f32 %v228, %v271
    %v304 = vmul.f32 %v228, %v272
    %v305 = vmul.f32 %v228, %v273
    %v306 = vmul.f32 %v228, %v274
    %v307 = vmul.f32 %v228, %v275
    %v308 = vmul.f32 %v228, %v276
    %v309 = vmul.f32 %v228, %v277
    %v310 = vmul.f32 %v232, %v270
    %v311 = vmul.f32 %v232, %v271
    %v312 = vmul.f32 %v232, %v272
    %v313 = vmul.f32 %v232, %v273
    %v314 = vmul.f32 %v232, %v274
    %v315 = vmul.f32 %v232, %v275
    %v316 = vmul.f32 %v232, %v276
    %v317 = vmul.f32 %v232, %v277
    %v318 = vmul.f32 %v236, %v270
    %v319 = vmul.f32 %v236, %v271
    %v320 = vmul.f32 %v236, %v272
    %v321 = vmul.f32 %v236, %v273
    %v322 = vmul.f32 %v236, %v274
    %v323 = vmul.f32 %v236, %v275
    %v324 = vmul.f32 %v236, %v276
    %v325 = vmul.f32 %v236, %v277
    %v326 = vmul.f32 %v240, %v270
    %v327 = vmul.f32 %v240, %v271
    %v328 = vmul.f32 %v240, %v272
    %v329 = vmul.f32 %v240, %v273
    %v330 = vmul.f32 %v240, %v274
    %v331 = vmul.f32 %v240, %v275
    %v332 = vmul.f32 %v240, %v276
    %v333 = vmul.f32 %v240, %v277
    %v334 = vmul.f32 %v244, %v270
    %v335 = vmul.f32 %v244, %v271
    %v336 = vmul.f32 %v244, %v272
    %v337 = vmul.f32 %v244, %v273
    %v338 = vmul.f32 %v244, %v274
    %v339 = vmul.f32 %v244, %v275
    %v340 = vmul.f32 %v244, %v276
    %v341 = vmul.f32 %v244, %v277
    %v342 = vmul.f32 %v248, %v270
    %v343 = vmul.f32 %v248, %v271
    %v344 = vmul.f32 %v248, %v272
    %v345 = vmul.f32 %v248, %v273
    %v346 = vmul.f32 %v248, %v274
    %v347 = vmul.f32 %v248, %v275
    %v348 = vmul.f32 %v248, %v276
    %v349 = vmul.f32 %v248, %v277
    %v350 = vmul.f32 %v252, %v270
    %v351 = vmul.f32 %v252, %v271
    %v352 = vmul.f32 %v252, %v272
    %v353 = vmul.f32 %v252, %v273
    %v354 = vmul.f32 %v252, %v274
    %v355 = vmul.f32 %v252, %v275
    %v356 = vmul.f32 %v252, %v276
    %v357 = vmul.f32 %v252, %v277
    %v358 = vadd.f32 %v134, %v278
    %v359 = vadd.f32 %v135, %v279
    %v360 = vadd.f32 %v136, %v280
    %v361 = vadd.f32 %v137, %v281
    %v362 = vadd.f32 %v138, %v282
    %v363 = vadd.f32 %v139, %v283
    %v364 = vadd.f32 %v140, %v284
    %v365 = vadd.f32 %v141, %v285
    %v366 = vadd.f32 %v142, %v286
    %v367 = vadd.f32 %v143, %v287
    %v368 = vadd.f32 %v144, %v288
    %v369 = vadd.f32 %v145, %v289
    %v370 = vadd.f32 %v146, %v290
    %v371 = vadd.f32 %v147, %v291
    %v372 = vadd.f32 %v148, %v292
    %v373 = vadd.f32 %v149, %v293
    %v374 = vadd.f32 %v150, %v294
    %v375 = vadd.f32 %v151, %v295
    %v376 = vadd.f32 %v152, %v296
    %v377 = vadd.f32 %v153, %v297
    %v378 = vadd.f32 %v154, %v298
    %v379 = vadd.f32 %v155, %v299
    %v380 = vadd.f32 %v156, %v300
    %v381 = vadd.f32 %v157, %v301
    %v382 = vadd.f32 %v158, %v302
    %v383 = vadd.f32 %v159, %v303
    %v384 = vadd.f32 %v160, %v304
    %v385 = vadd.f32 %v161, %v305
    %v386 = vadd.f32 %v162, %v306
    %v387 = vadd.f32 %v163, %v307
    %v388 = vadd.f32 %v164, %v308
    %v389 = vadd.f32 %v165, %v309
    %v390 = vadd.f32 %v166, %v310
    %v391 = vadd.f32 %v167, %v311
    %v392 = vadd.f32 %v168, %v312
    %v393 = vadd.f32 %v169, %v313
    %v394 = vadd.f32 %v170, %v314
    %v395 = vadd.f32 %v171, %v315
    %v396 = vadd.f32 %v172, %v316
    %v397 = vadd.f32 %v173, %v317
    %v398 = vadd.f32 %v174, %v318
    %v399 = vadd.f32 %v175, %v319
    %v400 = vadd.f32 %v176, %v320
    %v401 = vadd.f32 %v177, %v321
    %v402 = vadd.f32 %v178, %v322
    %v403 = vadd.f32 %v179, %v323
    %v404 = vadd.f32 %v180, %v324
    %v405 = vadd.f32 %v181, %v325
    %v406 = vadd.f32 %v182, %v326
    %v407 = vadd.f32 %v183, %v327
    %v408 = vadd.f32 %v184, %v328
    %v409 = vadd.f32 %v185, %v329
    %v410 = vadd.f32 %v186, %v330
    %v411 = vadd.f32 %v187, %v331
    %v412 = vadd.f32 %v188, %v332
    %v413 = vadd.f32 %v189, %v333
    %v414 = vadd.f32 %v190, %v334
    %v415 = vadd.f32 %v191, %v335
    %v416 = vadd.f32 %v192, %v336
    %v417 = vadd.f32 %v193, %v337
    %v418 = vadd.f32 %v194, %v338
    %v419 = vadd.f32 %v195, %v339
    %v420 = vadd.f32 %v196, %v340
    %v421 = vadd.f32 %v197, %v341
    %v422 = vadd.f32 %v198, %v342
    %v423 = vadd.f32 %v199, %v343
    %v424 = vadd.f32 %v200, %v344
    %v425 = vadd.f32 %v201, %v345
    %v426 = vadd.f32 %v202, %v346
    %v427 = vadd.f32 %v203, %v347
    %v428 = vadd.f32 %v204, %v348
    %v429 = vadd.f32 %v205, %v349
    %v430 = vadd.f32 %v206, %v350
    %v431 = vadd.f32 %v207, %v351
    %v432 = vadd.f32 %v208, %v352
    %v433 = vadd.f32 %v209, %v353
    %v434 = vadd.f32 %v210, %v354
    %v435 = vadd.f32 %v211, %v355
    %v436 = vadd.f32 %v212, %v356
    %v437 = vadd.f32 %v213, %v357
    %v438 = vld [vmem:[%s2] sm:$0xff]
    %v439 = vld [vmem:[%s2 + $0x8] sm:$0xff]
    %v440 = vld [vmem:[%s2 + $0x10] sm:$0xff]
    %v441 = vld [vmem:[%s2 + $0x18] sm:$0xff]
    %v442 = vld [vmem:[%s2 + $0x20] sm:$0xff]
    %v443 = vld [vmem:[%s2 + $0x28] sm:$0xff]
    %v444 = vld [vmem:[%s2 + $0x30] sm:$0xff]
    %v445 = vld [vmem:[%s2 + $0x38] sm:$0xff]
    %v446 = vld [vmem:[%s2 + $0x40] sm:$0xff]
    %v447 = vld [vmem:[%s2 + $0x48] sm:$0xff]
    %449 = vset.pattern.permute.xlu0 0
    %450 = vperm.xlu0 %449, %v438
    %v451 = vpop.permute.xlu0 %450
    %454 = vset.pattern.permute.xlu0 0
    %455 = vperm.xlu0 %454, %v439
    %v456 = vpop.permute.xlu0 %455
    %459 = vset.pattern.permute.xlu0 0
    %460 = vperm.xlu0 %459, %v440
    %v461 = vpop.permute.xlu0 %460
    %464 = vset.pattern.permute.xlu0 0
    %465 = vperm.xlu0 %464, %v441
    %v466 = vpop.permute.xlu0 %465
    %469 = vset.pattern.permute.xlu0 0
    %470 = vperm.xlu0 %469, %v442
    %v471 = vpop.permute.xlu0 %470
    %474 = vset.pattern.permute.xlu0 0
    %475 = vperm.xlu0 %474, %v443
    %v476 = vpop.permute.xlu0 %475
    %479 = vset.pattern.permute.xlu0 0
    %480 = vperm.xlu0 %479, %v444
    %v481 = vpop.permute.xlu0 %480
    %484 = vset.pattern.permute.xlu0 0
    %485 = vperm.xlu0 %484, %v445
    %v486 = vpop.permute.xlu0 %485
    %489 = vset.pattern.permute.xlu0 0
    %490 = vperm.xlu0 %489, %v446
    %v491 = vpop.permute.xlu0 %490
    %494 = vset.pattern.permute.xlu0 0
    %495 = vperm.xlu0 %494, %v447
    %v496 = vpop.permute.xlu0 %495
    %v498 = vadd.f32 %v358, %v451
    %v499 = vadd.f32 %v359, %v451
    %v500 = vadd.f32 %v360, %v451
    %v501 = vadd.f32 %v361, %v451
    %v502 = vadd.f32 %v362, %v451
    %v503 = vadd.f32 %v363, %v451
    %v504 = vadd.f32 %v364, %v451
    %v505 = vadd.f32 %v365, %v451
    %v506 = vadd.f32 %v366, %v456
    %v507 = vadd.f32 %v367, %v456
    %v508 = vadd.f32 %v368, %v456
    %v509 = vadd.f32 %v369, %v456
    %v510 = vadd.f32 %v370, %v456
    %v511 = vadd.f32 %v371, %v456
    %v512 = vadd.f32 %v372, %v456
    %v513 = vadd.f32 %v373, %v456
    %v514 = vadd.f32 %v374, %v461
    %v515 = vadd.f32 %v375, %v461
    %v516 = vadd.f32 %v376, %v461
    %v517 = vadd.f32 %v377, %v461
    %v518 = vadd.f32 %v378, %v461
    %v519 = vadd.f32 %v379, %v461
    %v520 = vadd.f32 %v380, %v461
    %v521 = vadd.f32 %v381, %v461
    %v522 = vadd.f32 %v382, %v466
    %v523 = vadd.f32 %v383, %v466
    %v524 = vadd.f32 %v384, %v466
    %v525 = vadd.f32 %v385, %v466
    %v526 = vadd.f32 %v386, %v466
    %v527 = vadd.f32 %v387, %v466
    %v528 = vadd.f32 %v388, %v466
    %v529 = vadd.f32 %v389, %v466
    %v530 = vadd.f32 %v390, %v471
    %v531 = vadd.f32 %v391, %v471
    %v532 = vadd.f32 %v392, %v471
    %v533 = vadd.f32 %v393, %v471
    %v534 = vadd.f32 %v394, %v471
    %v535 = vadd.f32 %v395, %v471
    %v536 = vadd.f32 %v396, %v471
    %v537 = vadd.f32 %v397, %v471
    %v538 = vadd.f32 %v398, %v476
    %v539 = vadd.f32 %v399, %v476
    %v540 = vadd.f32 %v400, %v476
    %v541 = vadd.f32 %v401, %v476
    %v542 = vadd.f32 %v402, %v476
    %v543 = vadd.f32 %v403, %v476
    %v544 = vadd.f32 %v404, %v476
    %v545 = vadd.f32 %v405, %v476
    %v546 = vadd.f32 %v406, %v481
    %v547 = vadd.f32 %v407, %v481
    %v548 = vadd.f32 %v408, %v481
    %v549 = vadd.f32 %v409, %v481
    %v550 = vadd.f32 %v410, %v481
    %v551 = vadd.f32 %v411, %v481
    %v552 = vadd.f32 %v412, %v481
    %v553 = vadd.f32 %v413, %v481
    %v554 = vadd.f32 %v414, %v486
    %v555 = vadd.f32 %v415, %v486
    %v556 = vadd.f32 %v416, %v486
    %v557 = vadd.f32 %v417, %v486
    %v558 = vadd.f32 %v418, %v486
    %v559 = vadd.f32 %v419, %v486
    %v560 = vadd.f32 %v420, %v486
    %v561 = vadd.f32 %v421, %v486
    %v562 = vadd.f32 %v422, %v491
    %v563 = vadd.f32 %v423, %v491
    %v564 = vadd.f32 %v424, %v491
    %v565 = vadd.f32 %v425, %v491
    %v566 = vadd.f32 %v426, %v491
    %v567 = vadd.f32 %v427, %v491
    %v568 = vadd.f32 %v428, %v491
    %v569 = vadd.f32 %v429, %v491
    %v570 = vadd.f32 %v430, %v496
    %v571 = vadd.f32 %v431, %v496
    %v572 = vadd.f32 %v432, %v496
    %v573 = vadd.f32 %v433, %v496
    %v574 = vadd.f32 %v434, %v496
    %v575 = vadd.f32 %v435, %v496
    %v576 = vadd.f32 %v436, %v496
    %v577 = vadd.f32 %v437, %v496
    %v578 = vtanh.pop %v498
    %v579 = vtanh.pop %v499
    %v580 = vtanh.pop %v500
    %v581 = vtanh.pop %v501
    %v582 = vtanh.pop %v502
    %v583 = vtanh.pop %v503
    %v584 = vtanh.pop %v504
    %v585 = vtanh.pop %v505
    %v586 = vtanh.pop %v506
    %v587 = vtanh.pop %v507
    %v588 = vtanh.pop %v508
    %v589 = vtanh.pop %v509
    %v590 = vtanh.pop %v510
    %v591 = vtanh.pop %v511
    %v592 = vtanh.pop %v512
    %v593 = vtanh.pop %v513
    %v594 = vtanh.pop %v514
    %v595 = vtanh.pop %v515
    %v596 = vtanh.pop %v516
    %v597 = vtanh.pop %v517
    %v598 = vtanh.pop %v518
    %v599 = vtanh.pop %v519
    %v600 = vtanh.pop %v520
    %v601 = vtanh.pop %v521
    %v602 = vtanh.pop %v522
    %v603 = vtanh.pop %v523
    %v604 = vtanh.pop %v524
    %v605 = vtanh.pop %v525
    %v606 = vtanh.pop %v526
    %v607 = vtanh.pop %v527
    %v608 = vtanh.pop %v528
    %v609 = vtanh.pop %v529
    %v610 = vtanh.pop %v530
    %v611 = vtanh.pop %v531
    %v612 = vtanh.pop %v532
    %v613 = vtanh.pop %v533
    %v614 = vtanh.pop %v534
    %v615 = vtanh.pop %v535
    %v616 = vtanh.pop %v536
    %v617 = vtanh.pop %v537
    %v618 = vtanh.pop %v538
    %v619 = vtanh.pop %v539
    %v620 = vtanh.pop %v540
    %v621 = vtanh.pop %v541
    %v622 = vtanh.pop %v542
    %v623 = vtanh.pop %v543
    %v624 = vtanh.pop %v544
    %v625 = vtanh.pop %v545
    %v626 = vtanh.pop %v546
    %v627 = vtanh.pop %v547
    %v628 = vtanh.pop %v548
    %v629 = vtanh.pop %v549
    %v630 = vtanh.pop %v550
    %v631 = vtanh.pop %v551
    %v632 = vtanh.pop %v552
    %v633 = vtanh.pop %v553
    %v634 = vtanh.pop %v554
    %v635 = vtanh.pop %v555
    %v636 = vtanh.pop %v556
    %v637 = vtanh.pop %v557
    %v638 = vtanh.pop %v558
    %v639 = vtanh.pop %v559
    %v640 = vtanh.pop %v560
    %v641 = vtanh.pop %v561
    %v642 = vtanh.pop %v562
    %v643 = vtanh.pop %v563
    %v644 = vtanh.pop %v564
    %v645 = vtanh.pop %v565
    %v646 = vtanh.pop %v566
    %v647 = vtanh.pop %v567
    %v648 = vtanh.pop %v568
    %v649 = vtanh.pop %v569
    %v650 = vtanh.pop %v570
    %v651 = vtanh.pop %v571
    %v652 = vtanh.pop %v572
    %v653 = vtanh.pop %v573
    %v654 = vtanh.pop %v574
    %v655 = vtanh.pop %v575
    %v656 = vtanh.pop %v576
    %v657 = vtanh.pop %v577
    %v658 = vld [vmem:[%s3] sm:$0xff]
    %v659 = vld [vmem:[%s3 + $0x8] sm:$0xff]
    %v660 = vld [vmem:[%s3 + $0x10] sm:$0xff]
    %v661 = vld [vmem:[%s3 + $0x18] sm:$0xff]
    %v662 = vld [vmem:[%s3 + $0x20] sm:$0xff]
    %v663 = vld [vmem:[%s3 + $0x28] sm:$0xff]
    %v664 = vld [vmem:[%s3 + $0x30] sm:$0xff]
    %v665 = vld [vmem:[%s3 + $0x38] sm:$0xff]
    %v666 = vld [vmem:[%s3 + $0x40] sm:$0xff]
    %v667 = vld [vmem:[%s3 + $0x48] sm:$0xff]
    %v668 = vld [vmem:[%s4] sm:$0xff]
    %v669 = vld [vmem:[%s4 + $0x8] sm:$0xff]
    %v670 = vld [vmem:[%s4 + $0x10] sm:$0xff]
    %v671 = vld [vmem:[%s4 + $0x18] sm:$0xff]
    %v672 = vld [vmem:[%s4 + $0x20] sm:$0xff]
    %v673 = vld [vmem:[%s4 + $0x28] sm:$0xff]
    %v674 = vld [vmem:[%s4 + $0x30] sm:$0xff]
    %v675 = vld [vmem:[%s4 + $0x38] sm:$0xff]
    %v676 = vld [vmem:[%s4 + $0x40] sm:$0xff]
    %v677 = vld [vmem:[%s4 + $0x48] sm:$0xff]
    %679 = vset.pattern.permute.xlu0 0
    %680 = vperm.xlu0 %679, %v668
    %v681 = vpop.permute.xlu0 %680
    %684 = vset.pattern.permute.xlu0 0
    %685 = vperm.xlu0 %684, %v669
    %v686 = vpop.permute.xlu0 %685
    %689 = vset.pattern.permute.xlu0 0
    %690 = vperm.xlu0 %689, %v670
    %v691 = vpop.permute.xlu0 %690
    %694 = vset.pattern.permute.xlu0 0
    %695 = vperm.xlu0 %694, %v671
    %v696 = vpop.permute.xlu0 %695
    %699 = vset.pattern.permute.xlu0 0
    %700 = vperm.xlu0 %699, %v672
    %v701 = vpop.permute.xlu0 %700
    %704 = vset.pattern.permute.xlu0 0
    %705 = vperm.xlu0 %704, %v673
    %v706 = vpop.permute.xlu0 %705
    %709 = vset.pattern.permute.xlu0 0
    %710 = vperm.xlu0 %709, %v674
    %v711 = vpop.permute.xlu0 %710
    %714 = vset.pattern.permute.xlu0 0
    %715 = vperm.xlu0 %714, %v675
    %v716 = vpop.permute.xlu0 %715
    %719 = vset.pattern.permute.xlu0 0
    %720 = vperm.xlu0 %719, %v676
    %v721 = vpop.permute.xlu0 %720
    %724 = vset.pattern.permute.xlu0 0
    %725 = vperm.xlu0 %724, %v677
    %v726 = vpop.permute.xlu0 %725
    %vm728 = vcmask 654336
    %v730 = vsel %vm728, %v658, 0
    %v733 = vsel %vm728, %v659, 0
    %v736 = vsel %vm728, %v660, 0
    %v739 = vsel %vm728, %v661, 0
    %v742 = vsel %vm728, %v662, 0
    %v745 = vsel %vm728, %v663, 0
    %v748 = vsel %vm728, %v664, 0
    %v751 = vsel %vm728, %v665, 0
    %v754 = vsel %vm728, %v666, 0
    %v757 = vsel %vm728, %v667, 0
    %759 = vmatpush.msra.mxu0 0.0
    %760 = vmatpush.msra.mxu0 0.0
    %761 = vmatpush.msra.mxu0 0.0
    %762 = vmatpush.msra.mxu0 0.0
    %763 = vmatpush.msra.mxu0 0.0
    %764 = vmatpush.msra.mxu0 0.0
    %765 = vmatpush.msra.mxu0 %v650
    %766 = vmatpush.msra.mxu0 %v642
    %767 = vmatpush.msra.mxu0 %v634
    %768 = vmatpush.msra.mxu0 %v626
    %769 = vmatpush.msra.mxu0 %v618
    %770 = vmatpush.msra.mxu0 %v610
    %771 = vmatpush.msra.mxu0 %v602
    %772 = vmatpush.msra.mxu0 %v594
    %773 = vmatpush.msra.mxu0 %v586
    %774 = vmatpush.msra.mxu0 %v578
    %775 = vmatmul.f32.gmra.mxu0 %v730
    %v776 = vpop.f32.mrf.mxu0
    %v777 = vadd.f32 %v681, %v776
    %778 = vmatmul.f32.gmra.mxu0 %v733
    %v779 = vpop.f32.mrf.mxu0
    %v780 = vadd.f32 %v686, %v779
    %781 = vmatmul.f32.gmra.mxu0 %v736
    %v782 = vpop.f32.mrf.mxu0
    %v783 = vadd.f32 %v691, %v782
    %784 = vmatmul.f32.gmra.mxu0 %v739
    %v785 = vpop.f32.mrf.mxu0
    %v786 = vadd.f32 %v696, %v785
    %787 = vmatmul.f32.gmra.mxu0 %v742
    %v788 = vpop.f32.mrf.mxu0
    %v789 = vadd.f32 %v701, %v788
    %790 = vmatmul.f32.gmra.mxu0 %v745
    %v791 = vpop.f32.mrf.mxu0
    %v792 = vadd.f32 %v706, %v791
    %793 = vmatmul.f32.gmra.mxu0 %v748
    %v794 = vpop.f32.mrf.mxu0
    %v795 = vadd.f32 %v711, %v794
    %796 = vmatmul.f32.gmra.mxu0 %v751
    %v797 = vpop.f32.mrf.mxu0
    %v798 = vadd.f32 %v716, %v797
    %799 = vmatmul.f32.gmra.mxu0 %v754
    %v800 = vpop.f32.mrf.mxu0
    %v801 = vadd.f32 %v721, %v800
    %802 = vmatmul.f32.gmra.mxu0 %v757
    %v803 = vpop.f32.mrf.mxu0
    %v804 = vadd.f32 %v726, %v803
    %805 = vdwg.mxu0
    %806 = vmatpush.msra.mxu0 0.0
    %807 = vmatpush.msra.mxu0 0.0
    %808 = vmatpush.msra.mxu0 0.0
    %809 = vmatpush.msra.mxu0 0.0
    %810 = vmatpush.msra.mxu0 0.0
    %811 = vmatpush.msra.mxu0 0.0
    %812 = vmatpush.msra.mxu0 %v651
    %813 = vmatpush.msra.mxu0 %v643
    %814 = vmatpush.msra.mxu0 %v635
    %815 = vmatpush.msra.mxu0 %v627
    %816 = vmatpush.msra.mxu0 %v619
    %817 = vmatpush.msra.mxu0 %v611
    %818 = vmatpush.msra.mxu0 %v603
    %819 = vmatpush.msra.mxu0 %v595
    %820 = vmatpush.msra.mxu0 %v587
    %821 = vmatpush.msra.mxu0 %v579
    %822 = vmatmul.f32.gmra.mxu0 %v730
    %v823 = vpop.f32.mrf.mxu0
    %v824 = vadd.f32 %v681, %v823
    %825 = vmatmul.f32.gmra.mxu0 %v733
    %v826 = vpop.f32.mrf.mxu0
    %v827 = vadd.f32 %v686, %v826
    %828 = vmatmul.f32.gmra.mxu0 %v736
    %v829 = vpop.f32.mrf.mxu0
    %v830 = vadd.f32 %v691, %v829
    %831 = vmatmul.f32.gmra.mxu0 %v739
    %v832 = vpop.f32.mrf.mxu0
    %v833 = vadd.f32 %v696, %v832
    %834 = vmatmul.f32.gmra.mxu0 %v742
    %v835 = vpop.f32.mrf.mxu0
    %v836 = vadd.f32 %v701, %v835
    %837 = vmatmul.f32.gmra.mxu0 %v745
    %v838 = vpop.f32.mrf.mxu0
    %v839 = vadd.f32 %v706, %v838
    %840 = vmatmul.f32.gmra.mxu0 %v748
    %v841 = vpop.f32.mrf.mxu0
    %v842 = vadd.f32 %v711, %v841
    %843 = vmatmul.f32.gmra.mxu0 %v751
    %v844 = vpop.f32.mrf.mxu0
    %v845 = vadd.f32 %v716, %v844
    %846 = vmatmul.f32.gmra.mxu0 %v754
    %v847 = vpop.f32.mrf.mxu0
    %v848 = vadd.f32 %v721, %v847
    %849 = vmatmul.f32.gmra.mxu0 %v757
    %v850 = vpop.f32.mrf.mxu0
    %v851 = vadd.f32 %v726, %v850
    %852 = vdwg.mxu0
    %853 = vmatpush.msra.mxu0 0.0
    %854 = vmatpush.msra.mxu0 0.0
    %855 = vmatpush.msra.mxu0 0.0
    %856 = vmatpush.msra.mxu0 0.0
    %857 = vmatpush.msra.mxu0 0.0
    %858 = vmatpush.msra.mxu0 0.0
    %859 = vmatpush.msra.mxu0 %v652
    %860 = vmatpush.msra.mxu0 %v644
    %861 = vmatpush.msra.mxu0 %v636
    %862 = vmatpush.msra.mxu0 %v628
    %863 = vmatpush.msra.mxu0 %v620
    %864 = vmatpush.msra.mxu0 %v612
    %865 = vmatpush.msra.mxu0 %v604
    %866 = vmatpush.msra.mxu0 %v596
    %867 = vmatpush.msra.mxu0 %v588
    %868 = vmatpush.msra.mxu0 %v580
    %869 = vmatmul.f32.gmra.mxu0 %v730
    %v870 = vpop.f32.mrf.mxu0
    %v871 = vadd.f32 %v681, %v870
    %872 = vmatmul.f32.gmra.mxu0 %v733
    %v873 = vpop.f32.mrf.mxu0
    %v874 = vadd.f32 %v686, %v873
    %875 = vmatmul.f32.gmra.mxu0 %v736
    %v876 = vpop.f32.mrf.mxu0
    %v877 = vadd.f32 %v691, %v876
    %878 = vmatmul.f32.gmra.mxu0 %v739
    %v879 = vpop.f32.mrf.mxu0
    %v880 = vadd.f32 %v696, %v879
    %881 = vmatmul.f32.gmra.mxu0 %v742
    %v882 = vpop.f32.mrf.mxu0
    %v883 = vadd.f32 %v701, %v882
    %884 = vmatmul.f32.gmra.mxu0 %v745
    %v885 = vpop.f32.mrf.mxu0
    %v886 = vadd.f32 %v706, %v885
    %887 = vmatmul.f32.gmra.mxu0 %v748
    %v888 = vpop.f32.mrf.mxu0
    %v889 = vadd.f32 %v711, %v888
    %890 = vmatmul.f32.gmra.mxu0 %v751
    %v891 = vpop.f32.mrf.mxu0
    %v892 = vadd.f32 %v716, %v891
    %893 = vmatmul.f32.gmra.mxu0 %v754
    %v894 = vpop.f32.mrf.mxu0
    %v895 = vadd.f32 %v721, %v894
    %896 = vmatmul.f32.gmra.mxu0 %v757
    %v897 = vpop.f32.mrf.mxu0
    %v898 = vadd.f32 %v726, %v897
    %899 = vdwg.mxu0
    %900 = vmatpush.msra.mxu0 0.0
    %901 = vmatpush.msra.mxu0 0.0
    %902 = vmatpush.msra.mxu0 0.0
    %903 = vmatpush.msra.mxu0 0.0
    %904 = vmatpush.msra.mxu0 0.0
    %905 = vmatpush.msra.mxu0 0.0
    %906 = vmatpush.msra.mxu0 %v653
    %907 = vmatpush.msra.mxu0 %v645
    %908 = vmatpush.msra.mxu0 %v637
    %909 = vmatpush.msra.mxu0 %v629
    %910 = vmatpush.msra.mxu0 %v621
    %911 = vmatpush.msra.mxu0 %v613
    %912 = vmatpush.msra.mxu0 %v605
    %913 = vmatpush.msra.mxu0 %v597
    %914 = vmatpush.msra.mxu0 %v589
    %915 = vmatpush.msra.mxu0 %v581
    %916 = vmatmul.f32.gmra.mxu0 %v730
    %v917 = vpop.f32.mrf.mxu0
    %v918 = vadd.f32 %v681, %v917
    %919 = vmatmul.f32.gmra.mxu0 %v733
    %v920 = vpop.f32.mrf.mxu0
    %v921 = vadd.f32 %v686, %v920
    %922 = vmatmul.f32.gmra.mxu0 %v736
    %v923 = vpop.f32.mrf.mxu0
    %v924 = vadd.f32 %v691, %v923
    %925 = vmatmul.f32.gmra.mxu0 %v739
    %v926 = vpop.f32.mrf.mxu0
    %v927 = vadd.f32 %v696, %v926
    %928 = vmatmul.f32.gmra.mxu0 %v742
    %v929 = vpop.f32.mrf.mxu0
    %v930 = vadd.f32 %v701, %v929
    %931 = vmatmul.f32.gmra.mxu0 %v745
    %v932 = vpop.f32.mrf.mxu0
    %v933 = vadd.f32 %v706, %v932
    %934 = vmatmul.f32.gmra.mxu0 %v748
    %v935 = vpop.f32.mrf.mxu0
    %v936 = vadd.f32 %v711, %v935
    %937 = vmatmul.f32.gmra.mxu0 %v751
    %v938 = vpop.f32.mrf.mxu0
    %v939 = vadd.f32 %v716, %v938
    %940 = vmatmul.f32.gmra.mxu0 %v754
    %v941 = vpop.f32.mrf.mxu0
    %v942 = vadd.f32 %v721, %v941
    %943 = vmatmul.f32.gmra.mxu0 %v757
    %v944 = vpop.f32.mrf.mxu0
    %v945 = vadd.f32 %v726, %v944
    %946 = vdwg.mxu0
    %947 = vmatpush.msra.mxu0 0.0
    %948 = vmatpush.msra.mxu0 0.0
    %949 = vmatpush.msra.mxu0 0.0
    %950 = vmatpush.msra.mxu0 0.0
    %951 = vmatpush.msra.mxu0 0.0
    %952 = vmatpush.msra.mxu0 0.0
    %953 = vmatpush.msra.mxu0 %v654
    %954 = vmatpush.msra.mxu0 %v646
    %955 = vmatpush.msra.mxu0 %v638
    %956 = vmatpush.msra.mxu0 %v630
    %957 = vmatpush.msra.mxu0 %v622
    %958 = vmatpush.msra.mxu0 %v614
    %959 = vmatpush.msra.mxu0 %v606
    %960 = vmatpush.msra.mxu0 %v598
    %961 = vmatpush.msra.mxu0 %v590
    %962 = vmatpush.msra.mxu0 %v582
    %963 = vmatmul.f32.gmra.mxu0 %v730
    %v964 = vpop.f32.mrf.mxu0
    %v965 = vadd.f32 %v681, %v964
    %966 = vmatmul.f32.gmra.mxu0 %v733
    %v967 = vpop.f32.mrf.mxu0
    %v968 = vadd.f32 %v686, %v967
    %969 = vmatmul.f32.gmra.mxu0 %v736
    %v970 = vpop.f32.mrf.mxu0
    %v971 = vadd.f32 %v691, %v970
    %972 = vmatmul.f32.gmra.mxu0 %v739
    %v973 = vpop.f32.mrf.mxu0
    %v974 = vadd.f32 %v696, %v973
    %975 = vmatmul.f32.gmra.mxu0 %v742
    %v976 = vpop.f32.mrf.mxu0
    %v977 = vadd.f32 %v701, %v976
    %978 = vmatmul.f32.gmra.mxu0 %v745
    %v979 = vpop.f32.mrf.mxu0
    %v980 = vadd.f32 %v706, %v979
    %981 = vmatmul.f32.gmra.mxu0 %v748
    %v982 = vpop.f32.mrf.mxu0
    %v983 = vadd.f32 %v711, %v982
    %984 = vmatmul.f32.gmra.mxu0 %v751
    %v985 = vpop.f32.mrf.mxu0
    %v986 = vadd.f32 %v716, %v985
    %987 = vmatmul.f32.gmra.mxu0 %v754
    %v988 = vpop.f32.mrf.mxu0
    %v989 = vadd.f32 %v721, %v988
    %990 = vmatmul.f32.gmra.mxu0 %v757
    %v991 = vpop.f32.mrf.mxu0
    %v992 = vadd.f32 %v726, %v991
    %993 = vdwg.mxu0
    %994 = vmatpush.msra.mxu0 0.0
    %995 = vmatpush.msra.mxu0 0.0
    %996 = vmatpush.msra.mxu0 0.0
    %997 = vmatpush.msra.mxu0 0.0
    %998 = vmatpush.msra.mxu0 0.0
    %999 = vmatpush.msra.mxu0 0.0
    %1000 = vmatpush.msra.mxu0 %v655
    %1001 = vmatpush.msra.mxu0 %v647
    %1002 = vmatpush.msra.mxu0 %v639
    %1003 = vmatpush.msra.mxu0 %v631
    %1004 = vmatpush.msra.mxu0 %v623
    %1005 = vmatpush.msra.mxu0 %v615
    %1006 = vmatpush.msra.mxu0 %v607
    %1007 = vmatpush.msra.mxu0 %v599
    %1008 = vmatpush.msra.mxu0 %v591
    %1009 = vmatpush.msra.mxu0 %v583
    %1010 = vmatmul.f32.gmra.mxu0 %v730
    %v1011 = vpop.f32.mrf.mxu0
    %v1012 = vadd.f32 %v681, %v1011
    %1013 = vmatmul.f32.gmra.mxu0 %v733
    %v1014 = vpop.f32.mrf.mxu0
    %v1015 = vadd.f32 %v686, %v1014
    %1016 = vmatmul.f32.gmra.mxu0 %v736
    %v1017 = vpop.f32.mrf.mxu0
    %v1018 = vadd.f32 %v691, %v1017
    %1019 = vmatmul.f32.gmra.mxu0 %v739
    %v1020 = vpop.f32.mrf.mxu0
    %v1021 = vadd.f32 %v696, %v1020
    %1022 = vmatmul.f32.gmra.mxu0 %v742
    %v1023 = vpop.f32.mrf.mxu0
    %v1024 = vadd.f32 %v701, %v1023
    %1025 = vmatmul.f32.gmra.mxu0 %v745
    %v1026 = vpop.f32.mrf.mxu0
    %v1027 = vadd.f32 %v706, %v1026
    %1028 = vmatmul.f32.gmra.mxu0 %v748
    %v1029 = vpop.f32.mrf.mxu0
    %v1030 = vadd.f32 %v711, %v1029
    %1031 = vmatmul.f32.gmra.mxu0 %v751
    %v1032 = vpop.f32.mrf.mxu0
    %v1033 = vadd.f32 %v716, %v1032
    %1034 = vmatmul.f32.gmra.mxu0 %v754
    %v1035 = vpop.f32.mrf.mxu0
    %v1036 = vadd.f32 %v721, %v1035
    %1037 = vmatmul.f32.gmra.mxu0 %v757
    %v1038 = vpop.f32.mrf.mxu0
    %v1039 = vadd.f32 %v726, %v1038
    %1040 = vdwg.mxu0
    %1041 = vmatpush.msra.mxu0 0.0
    %1042 = vmatpush.msra.mxu0 0.0
    %1043 = vmatpush.msra.mxu0 0.0
    %1044 = vmatpush.msra.mxu0 0.0
    %1045 = vmatpush.msra.mxu0 0.0
    %1046 = vmatpush.msra.mxu0 0.0
    %1047 = vmatpush.msra.mxu0 %v656
    %1048 = vmatpush.msra.mxu0 %v648
    %1049 = vmatpush.msra.mxu0 %v640
    %1050 = vmatpush.msra.mxu0 %v632
    %1051 = vmatpush.msra.mxu0 %v624
    %1052 = vmatpush.msra.mxu0 %v616
    %1053 = vmatpush.msra.mxu0 %v608
    %1054 = vmatpush.msra.mxu0 %v600
    %1055 = vmatpush.msra.mxu0 %v592
    %1056 = vmatpush.msra.mxu0 %v584
    %1057 = vmatmul.f32.gmra.mxu0 %v730
    %v1058 = vpop.f32.mrf.mxu0
    %v1059 = vadd.f32 %v681, %v1058
    %1060 = vmatmul.f32.gmra.mxu0 %v733
    %v1061 = vpop.f32.mrf.mxu0
    %v1062 = vadd.f32 %v686, %v1061
    %1063 = vmatmul.f32.gmra.mxu0 %v736
    %v1064 = vpop.f32.mrf.mxu0
    %v1065 = vadd.f32 %v691, %v1064
    %1066 = vmatmul.f32.gmra.mxu0 %v739
    %v1067 = vpop.f32.mrf.mxu0
    %v1068 = vadd.f32 %v696, %v1067
    %1069 = vmatmul.f32.gmra.mxu0 %v742
    %v1070 = vpop.f32.mrf.mxu0
    %v1071 = vadd.f32 %v701, %v1070
    %1072 = vmatmul.f32.gmra.mxu0 %v745
    %v1073 = vpop.f32.mrf.mxu0
    %v1074 = vadd.f32 %v706, %v1073
    %1075 = vmatmul.f32.gmra.mxu0 %v748
    %v1076 = vpop.f32.mrf.mxu0
    %v1077 = vadd.f32 %v711, %v1076
    %1078 = vmatmul.f32.gmra.mxu0 %v751
    %v1079 = vpop.f32.mrf.mxu0
    %v1080 = vadd.f32 %v716, %v1079
    %1081 = vmatmul.f32.gmra.mxu0 %v754
    %v1082 = vpop.f32.mrf.mxu0
    %v1083 = vadd.f32 %v721, %v1082
    %1084 = vmatmul.f32.gmra.mxu0 %v757
    %v1085 = vpop.f32.mrf.mxu0
    %v1086 = vadd.f32 %v726, %v1085
    %1087 = vdwg.mxu0
    %1088 = vmatpush.msra.mxu0 0.0
    %1089 = vmatpush.msra.mxu0 0.0
    %1090 = vmatpush.msra.mxu0 0.0
    %1091 = vmatpush.msra.mxu0 0.0
    %1092 = vmatpush.msra.mxu0 0.0
    %1093 = vmatpush.msra.mxu0 0.0
    %1094 = vmatpush.msra.mxu0 %v657
    %1095 = vmatpush.msra.mxu0 %v649
    %1096 = vmatpush.msra.mxu0 %v641
    %1097 = vmatpush.msra.mxu0 %v633
    %1098 = vmatpush.msra.mxu0 %v625
    %1099 = vmatpush.msra.mxu0 %v617
    %1100 = vmatpush.msra.mxu0 %v609
    %1101 = vmatpush.msra.mxu0 %v601
    %1102 = vmatpush.msra.mxu0 %v593
    %1103 = vmatpush.msra.mxu0 %v585
    %1104 = vmatmul.f32.gmra.mxu0 %v730
    %v1105 = vpop.f32.mrf.mxu0
    %v1106 = vadd.f32 %v681, %v1105
    %1107 = vmatmul.f32.gmra.mxu0 %v733
    %v1108 = vpop.f32.mrf.mxu0
    %v1109 = vadd.f32 %v686, %v1108
    %1110 = vmatmul.f32.gmra.mxu0 %v736
    %v1111 = vpop.f32.mrf.mxu0
    %v1112 = vadd.f32 %v691, %v1111
    %1113 = vmatmul.f32.gmra.mxu0 %v739
    %v1114 = vpop.f32.mrf.mxu0
    %v1115 = vadd.f32 %v696, %v1114
    %1116 = vmatmul.f32.gmra.mxu0 %v742
    %v1117 = vpop.f32.mrf.mxu0
    %v1118 = vadd.f32 %v701, %v1117
    %1119 = vmatmul.f32.gmra.mxu0 %v745
    %v1120 = vpop.f32.mrf.mxu0
    %v1121 = vadd.f32 %v706, %v1120
    %1122 = vmatmul.f32.gmra.mxu0 %v748
    %v1123 = vpop.f32.mrf.mxu0
    %v1124 = vadd.f32 %v711, %v1123
    %1125 = vmatmul.f32.gmra.mxu0 %v751
    %v1126 = vpop.f32.mrf.mxu0
    %v1127 = vadd.f32 %v716, %v1126
    %1128 = vmatmul.f32.gmra.mxu0 %v754
    %v1129 = vpop.f32.mrf.mxu0
    %v1130 = vadd.f32 %v721, %v1129
    %1131 = vmatmul.f32.gmra.mxu0 %v757
    %v1132 = vpop.f32.mrf.mxu0
    %v1133 = vadd.f32 %v726, %v1132
    %1134 = vdwg.mxu0
    %v1135 = vtanh.pop %v777
    %v1136 = vtanh.pop %v824
    %v1137 = vtanh.pop %v871
    %v1138 = vtanh.pop %v918
    %v1139 = vtanh.pop %v965
    %v1140 = vtanh.pop %v1012
    %v1141 = vtanh.pop %v1059
    %v1142 = vtanh.pop %v1106
    %v1143 = vtanh.pop %v780
    %v1144 = vtanh.pop %v827
    %v1145 = vtanh.pop %v874
    %v1146 = vtanh.pop %v921
    %v1147 = vtanh.pop %v968
    %v1148 = vtanh.pop %v1015
    %v1149 = vtanh.pop %v1062
    %v1150 = vtanh.pop %v1109
    %v1151 = vtanh.pop %v783
    %v1152 = vtanh.pop %v830
    %v1153 = vtanh.pop %v877
    %v1154 = vtanh.pop %v924
    %v1155 = vtanh.pop %v971
    %v1156 = vtanh.pop %v1018
    %v1157 = vtanh.pop %v1065
    %v1158 = vtanh.pop %v1112
    %v1159 = vtanh.pop %v786
    %v1160 = vtanh.pop %v833
    %v1161 = vtanh.pop %v880
    %v1162 = vtanh.pop %v927
    %v1163 = vtanh.pop %v974
    %v1164 = vtanh.pop %v1021
    %v1165 = vtanh.pop %v1068
    %v1166 = vtanh.pop %v1115
    %v1167 = vtanh.pop %v789
    %v1168 = vtanh.pop %v836
    %v1169 = vtanh.pop %v883
    %v1170 = vtanh.pop %v930
    %v1171 = vtanh.pop %v977
    %v1172 = vtanh.pop %v1024
    %v1173 = vtanh.pop %v1071
    %v1174 = vtanh.pop %v1118
    %v1175 = vtanh.pop %v792
    %v1176 = vtanh.pop %v839
    %v1177 = vtanh.pop %v886
    %v1178 = vtanh.pop %v933
    %v1179 = vtanh.pop %v980
    %v1180 = vtanh.pop %v1027
    %v1181 = vtanh.pop %v1074
    %v1182 = vtanh.pop %v1121
    %v1183 = vtanh.pop %v795
    %v1184 = vtanh.pop %v842
    %v1185 = vtanh.pop %v889
    %v1186 = vtanh.pop %v936
    %v1187 = vtanh.pop %v983
    %v1188 = vtanh.pop %v1030
    %v1189 = vtanh.pop %v1077
    %v1190 = vtanh.pop %v1124
    %v1191 = vtanh.pop %v798
    %v1192 = vtanh.pop %v845
    %v1193 = vtanh.pop %v892
    %v1194 = vtanh.pop %v939
    %v1195 = vtanh.pop %v986
    %v1196 = vtanh.pop %v1033
    %v1197 = vtanh.pop %v1080
    %v1198 = vtanh.pop %v1127
    %v1199 = vtanh.pop %v801
    %v1200 = vtanh.pop %v848
    %v1201 = vtanh.pop %v895
    %v1202 = vtanh.pop %v942
    %v1203 = vtanh.pop %v989
    %v1204 = vtanh.pop %v1036
    %v1205 = vtanh.pop %v1083
    %v1206 = vtanh.pop %v1130
    %v1207 = vtanh.pop %v804
    %v1208 = vtanh.pop %v851
    %v1209 = vtanh.pop %v898
    %v1210 = vtanh.pop %v945
    %v1211 = vtanh.pop %v992
    %v1212 = vtanh.pop %v1039
    %v1213 = vtanh.pop %v1086
    %v1214 = vtanh.pop %v1133
    %v1215 = vld [vmem:[%s5] sm:$0xff]
    %v1216 = vld [vmem:[%s5 + $0x8] sm:$0xff]
    %v1217 = vld [vmem:[%s5 + $0x10] sm:$0xff]
    %v1218 = vld [vmem:[%s5 + $0x18] sm:$0xff]
    %v1219 = vld [vmem:[%s5 + $0x20] sm:$0xff]
    %v1220 = vld [vmem:[%s5 + $0x28] sm:$0xff]
    %v1221 = vld [vmem:[%s5 + $0x30] sm:$0xff]
    %v1222 = vld [vmem:[%s5 + $0x38] sm:$0xff]
    %v1223 = vld [vmem:[%s5 + $0x40] sm:$0xff]
    %v1224 = vld [vmem:[%s5 + $0x48] sm:$0xff]
    %v1225 = vld [vmem:[%s6] sm:$0xff]
    %v1226 = vld [vmem:[%s6 + $0x8] sm:$0xff]
    %v1227 = vld [vmem:[%s6 + $0x10] sm:$0xff]
    %v1228 = vld [vmem:[%s6 + $0x18] sm:$0xff]
    %v1229 = vld [vmem:[%s6 + $0x20] sm:$0xff]
    %v1230 = vld [vmem:[%s6 + $0x28] sm:$0xff]
    %v1231 = vld [vmem:[%s6 + $0x30] sm:$0xff]
    %v1232 = vld [vmem:[%s6 + $0x38] sm:$0xff]
    %v1233 = vld [vmem:[%s6 + $0x40] sm:$0xff]
    %v1234 = vld [vmem:[%s6 + $0x48] sm:$0xff]
    %1236 = vset.pattern.permute.xlu0 0
    %1237 = vperm.xlu0 %1236, %v1225
    %v1238 = vpop.permute.xlu0 %1237
    %1241 = vset.pattern.permute.xlu0 0
    %1242 = vperm.xlu0 %1241, %v1226
    %v1243 = vpop.permute.xlu0 %1242
    %1246 = vset.pattern.permute.xlu0 0
    %1247 = vperm.xlu0 %1246, %v1227
    %v1248 = vpop.permute.xlu0 %1247
    %1251 = vset.pattern.permute.xlu0 0
    %1252 = vperm.xlu0 %1251, %v1228
    %v1253 = vpop.permute.xlu0 %1252
    %1256 = vset.pattern.permute.xlu0 0
    %1257 = vperm.xlu0 %1256, %v1229
    %v1258 = vpop.permute.xlu0 %1257
    %1261 = vset.pattern.permute.xlu0 0
    %1262 = vperm.xlu0 %1261, %v1230
    %v1263 = vpop.permute.xlu0 %1262
    %1266 = vset.pattern.permute.xlu0 0
    %1267 = vperm.xlu0 %1266, %v1231
    %v1268 = vpop.permute.xlu0 %1267
    %1271 = vset.pattern.permute.xlu0 0
    %1272 = vperm.xlu0 %1271, %v1232
    %v1273 = vpop.permute.xlu0 %1272
    %1276 = vset.pattern.permute.xlu0 0
    %1277 = vperm.xlu0 %1276, %v1233
    %v1278 = vpop.permute.xlu0 %1277
    %1281 = vset.pattern.permute.xlu0 0
    %1282 = vperm.xlu0 %1281, %v1234
    %v1283 = vpop.permute.xlu0 %1282
    %v1286 = vsel %vm728, %v1215, 0
    %v1289 = vsel %vm728, %v1216, 0
    %v1292 = vsel %vm728, %v1217, 0
    %v1295 = vsel %vm728, %v1218, 0
    %v1298 = vsel %vm728, %v1219, 0
    %v1301 = vsel %vm728, %v1220, 0
    %v1304 = vsel %vm728, %v1221, 0
    %v1307 = vsel %vm728, %v1222, 0
    %v1310 = vsel %vm728, %v1223, 0
    %v1313 = vsel %vm728, %v1224, 0
    %1315 = vmatpush.msra.mxu0 0.0
    %1316 = vmatpush.msra.mxu0 0.0
    %1317 = vmatpush.msra.mxu0 0.0
    %1318 = vmatpush.msra.mxu0 0.0
    %1319 = vmatpush.msra.mxu0 0.0
    %1320 = vmatpush.msra.mxu0 0.0
    %1321 = vmatpush.msra.mxu0 %v1207
    %1322 = vmatpush.msra.mxu0 %v1199
    %1323 = vmatpush.msra.mxu0 %v1191
    %1324 = vmatpush.msra.mxu0 %v1183
    %1325 = vmatpush.msra.mxu0 %v1175
    %1326 = vmatpush.msra.mxu0 %v1167
    %1327 = vmatpush.msra.mxu0 %v1159
    %1328 = vmatpush.msra.mxu0 %v1151
    %1329 = vmatpush.msra.mxu0 %v1143
    %1330 = vmatpush.msra.mxu0 %v1135
    %1331 = vmatmul.f32.gmra.mxu0 %v1286
    %v1332 = vpop.f32.mrf.mxu0
    %v1333 = vadd.f32 %v1238, %v1332
    %1334 = vmatmul.f32.gmra.mxu0 %v1289
    %v1335 = vpop.f32.mrf.mxu0
    %v1336 = vadd.f32 %v1243, %v1335
    %1337 = vmatmul.f32.gmra.mxu0 %v1292
    %v1338 = vpop.f32.mrf.mxu0
    %v1339 = vadd.f32 %v1248, %v1338
    %1340 = vmatmul.f32.gmra.mxu0 %v1295
    %v1341 = vpop.f32.mrf.mxu0
    %v1342 = vadd.f32 %v1253, %v1341
    %1343 = vmatmul.f32.gmra.mxu0 %v1298
    %v1344 = vpop.f32.mrf.mxu0
    %v1345 = vadd.f32 %v1258, %v1344
    %1346 = vmatmul.f32.gmra.mxu0 %v1301
    %v1347 = vpop.f32.mrf.mxu0
    %v1348 = vadd.f32 %v1263, %v1347
    %1349 = vmatmul.f32.gmra.mxu0 %v1304
    %v1350 = vpop.f32.mrf.mxu0
    %v1351 = vadd.f32 %v1268, %v1350
    %1352 = vmatmul.f32.gmra.mxu0 %v1307
    %v1353 = vpop.f32.mrf.mxu0
    %v1354 = vadd.f32 %v1273, %v1353
    %1355 = vmatmul.f32.gmra.mxu0 %v1310
    %v1356 = vpop.f32.mrf.mxu0
    %v1357 = vadd.f32 %v1278, %v1356
    %1358 = vmatmul.f32.gmra.mxu0 %v1313
    %v1359 = vpop.f32.mrf.mxu0
    %v1360 = vadd.f32 %v1283, %v1359
    %1361 = vdwg.mxu0
    %1362 = vmatpush.msra.mxu0 0.0
    %1363 = vmatpush.msra.mxu0 0.0
    %1364 = vmatpush.msra.mxu0 0.0
    %1365 = vmatpush.msra.mxu0 0.0
    %1366 = vmatpush.msra.mxu0 0.0
    %1367 = vmatpush.msra.mxu0 0.0
    %1368 = vmatpush.msra.mxu0 %v1208
    %1369 = vmatpush.msra.mxu0 %v1200
    %1370 = vmatpush.msra.mxu0 %v1192
    %1371 = vmatpush.msra.mxu0 %v1184
    %1372 = vmatpush.msra.mxu0 %v1176
    %1373 = vmatpush.msra.mxu0 %v1168
    %1374 = vmatpush.msra.mxu0 %v1160
    %1375 = vmatpush.msra.mxu0 %v1152
    %1376 = vmatpush.msra.mxu0 %v1144
    %1377 = vmatpush.msra.mxu0 %v1136
    %1378 = vmatmul.f32.gmra.mxu0 %v1286
    %v1379 = vpop.f32.mrf.mxu0
    %v1380 = vadd.f32 %v1238, %v1379
    %1381 = vmatmul.f32.gmra.mxu0 %v1289
    %v1382 = vpop.f32.mrf.mxu0
    %v1383 = vadd.f32 %v1243, %v1382
    %1384 = vmatmul.f32.gmra.mxu0 %v1292
    %v1385 = vpop.f32.mrf.mxu0
    %v1386 = vadd.f32 %v1248, %v1385
    %1387 = vmatmul.f32.gmra.mxu0 %v1295
    %v1388 = vpop.f32.mrf.mxu0
    %v1389 = vadd.f32 %v1253, %v1388
    %1390 = vmatmul.f32.gmra.mxu0 %v1298
    %v1391 = vpop.f32.mrf.mxu0
    %v1392 = vadd.f32 %v1258, %v1391
    %1393 = vmatmul.f32.gmra.mxu0 %v1301
    %v1394 = vpop.f32.mrf.mxu0
    %v1395 = vadd.f32 %v1263, %v1394
    %1396 = vmatmul.f32.gmra.mxu0 %v1304
    %v1397 = vpop.f32.mrf.mxu0
    %v1398 = vadd.f32 %v1268, %v1397
    %1399 = vmatmul.f32.gmra.mxu0 %v1307
    %v1400 = vpop.f32.mrf.mxu0
    %v1401 = vadd.f32 %v1273, %v1400
    %1402 = vmatmul.f32.gmra.mxu0 %v1310
    %v1403 = vpop.f32.mrf.mxu0
    %v1404 = vadd.f32 %v1278, %v1403
    %1405 = vmatmul.f32.gmra.mxu0 %v1313
    %v1406 = vpop.f32.mrf.mxu0
    %v1407 = vadd.f32 %v1283, %v1406
    %1408 = vdwg.mxu0
    %1409 = vmatpush.msra.mxu0 0.0
    %1410 = vmatpush.msra.mxu0 0.0
    %1411 = vmatpush.msra.mxu0 0.0
    %1412 = vmatpush.msra.mxu0 0.0
    %1413 = vmatpush.msra.mxu0 0.0
    %1414 = vmatpush.msra.mxu0 0.0
    %1415 = vmatpush.msra.mxu0 %v1209
    %1416 = vmatpush.msra.mxu0 %v1201
    %1417 = vmatpush.msra.mxu0 %v1193
    %1418 = vmatpush.msra.mxu0 %v1185
    %1419 = vmatpush.msra.mxu0 %v1177
    %1420 = vmatpush.msra.mxu0 %v1169
    %1421 = vmatpush.msra.mxu0 %v1161
    %1422 = vmatpush.msra.mxu0 %v1153
    %1423 = vmatpush.msra.mxu0 %v1145
    %1424 = vmatpush.msra.mxu0 %v1137
    %1425 = vmatmul.f32.gmra.mxu0 %v1286
    %v1426 = vpop.f32.mrf.mxu0
    %v1427 = vadd.f32 %v1238, %v1426
    %1428 = vmatmul.f32.gmra.mxu0 %v1289
    %v1429 = vpop.f32.mrf.mxu0
    %v1430 = vadd.f32 %v1243, %v1429
    %1431 = vmatmul.f32.gmra.mxu0 %v1292
    %v1432 = vpop.f32.mrf.mxu0
    %v1433 = vadd.f32 %v1248, %v1432
    %1434 = vmatmul.f32.gmra.mxu0 %v1295
    %v1435 = vpop.f32.mrf.mxu0
    %v1436 = vadd.f32 %v1253, %v1435
    %1437 = vmatmul.f32.gmra.mxu0 %v1298
    %v1438 = vpop.f32.mrf.mxu0
    %v1439 = vadd.f32 %v1258, %v1438
    %1440 = vmatmul.f32.gmra.mxu0 %v1301
    %v1441 = vpop.f32.mrf.mxu0
    %v1442 = vadd.f32 %v1263, %v1441
    %1443 = vmatmul.f32.gmra.mxu0 %v1304
    %v1444 = vpop.f32.mrf.mxu0
    %v1445 = vadd.f32 %v1268, %v1444
    %1446 = vmatmul.f32.gmra.mxu0 %v1307
    %v1447 = vpop.f32.mrf.mxu0
    %v1448 = vadd.f32 %v1273, %v1447
    %1449 = vmatmul.f32.gmra.mxu0 %v1310
    %v1450 = vpop.f32.mrf.mxu0
    %v1451 = vadd.f32 %v1278, %v1450
    %1452 = vmatmul.f32.gmra.mxu0 %v1313
    %v1453 = vpop.f32.mrf.mxu0
    %v1454 = vadd.f32 %v1283, %v1453
    %1455 = vdwg.mxu0
    %1456 = vmatpush.msra.mxu0 0.0
    %1457 = vmatpush.msra.mxu0 0.0
    %1458 = vmatpush.msra.mxu0 0.0
    %1459 = vmatpush.msra.mxu0 0.0
    %1460 = vmatpush.msra.mxu0 0.0
    %1461 = vmatpush.msra.mxu0 0.0
    %1462 = vmatpush.msra.mxu0 %v1210
    %1463 = vmatpush.msra.mxu0 %v1202
    %1464 = vmatpush.msra.mxu0 %v1194
    %1465 = vmatpush.msra.mxu0 %v1186
    %1466 = vmatpush.msra.mxu0 %v1178
    %1467 = vmatpush.msra.mxu0 %v1170
    %1468 = vmatpush.msra.mxu0 %v1162
    %1469 = vmatpush.msra.mxu0 %v1154
    %1470 = vmatpush.msra.mxu0 %v1146
    %1471 = vmatpush.msra.mxu0 %v1138
    %1472 = vmatmul.f32.gmra.mxu0 %v1286
    %v1473 = vpop.f32.mrf.mxu0
    %v1474 = vadd.f32 %v1238, %v1473
    %1475 = vmatmul.f32.gmra.mxu0 %v1289
    %v1476 = vpop.f32.mrf.mxu0
    %v1477 = vadd.f32 %v1243, %v1476
    %1478 = vmatmul.f32.gmra.mxu0 %v1292
    %v1479 = vpop.f32.mrf.mxu0
    %v1480 = vadd.f32 %v1248, %v1479
    %1481 = vmatmul.f32.gmra.mxu0 %v1295
    %v1482 = vpop.f32.mrf.mxu0
    %v1483 = vadd.f32 %v1253, %v1482
    %1484 = vmatmul.f32.gmra.mxu0 %v1298
    %v1485 = vpop.f32.mrf.mxu0
    %v1486 = vadd.f32 %v1258, %v1485
    %1487 = vmatmul.f32.gmra.mxu0 %v1301
    %v1488 = vpop.f32.mrf.mxu0
    %v1489 = vadd.f32 %v1263, %v1488
    %1490 = vmatmul.f32.gmra.mxu0 %v1304
    %v1491 = vpop.f32.mrf.mxu0
    %v1492 = vadd.f32 %v1268, %v1491
    %1493 = vmatmul.f32.gmra.mxu0 %v1307
    %v1494 = vpop.f32.mrf.mxu0
    %v1495 = vadd.f32 %v1273, %v1494
    %1496 = vmatmul.f32.gmra.mxu0 %v1310
    %v1497 = vpop.f32.mrf.mxu0
    %v1498 = vadd.f32 %v1278, %v1497
    %1499 = vmatmul.f32.gmra.mxu0 %v1313
    %v1500 = vpop.f32.mrf.mxu0
    %v1501 = vadd.f32 %v1283, %v1500
    %1502 = vdwg.mxu0
    %1503 = vmatpush.msra.mxu0 0.0
    %1504 = vmatpush.msra.mxu0 0.0
    %1505 = vmatpush.msra.mxu0 0.0
    %1506 = vmatpush.msra.mxu0 0.0
    %1507 = vmatpush.msra.mxu0 0.0
    %1508 = vmatpush.msra.mxu0 0.0
    %1509 = vmatpush.msra.mxu0 %v1211
    %1510 = vmatpush.msra.mxu0 %v1203
    %1511 = vmatpush.msra.mxu0 %v1195
    %1512 = vmatpush.msra.mxu0 %v1187
    %1513 = vmatpush.msra.mxu0 %v1179
    %1514 = vmatpush.msra.mxu0 %v1171
    %1515 = vmatpush.msra.mxu0 %v1163
    %1516 = vmatpush.msra.mxu0 %v1155
    %1517 = vmatpush.msra.mxu0 %v1147
    %1518 = vmatpush.msra.mxu0 %v1139
    %1519 = vmatmul.f32.gmra.mxu0 %v1286
    %v1520 = vpop.f32.mrf.mxu0
    %v1521 = vadd.f32 %v1238, %v1520
    %1522 = vmatmul.f32.gmra.mxu0 %v1289
    %v1523 = vpop.f32.mrf.mxu0
    %v1524 = vadd.f32 %v1243, %v1523
    %1525 = vmatmul.f32.gmra.mxu0 %v1292
    %v1526 = vpop.f32.mrf.mxu0
    %v1527 = vadd.f32 %v1248, %v1526
    %1528 = vmatmul.f32.gmra.mxu0 %v1295
    %v1529 = vpop.f32.mrf.mxu0
    %v1530 = vadd.f32 %v1253, %v1529
    %1531 = vmatmul.f32.gmra.mxu0 %v1298
    %v1532 = vpop.f32.mrf.mxu0
    %v1533 = vadd.f32 %v1258, %v1532
    %1534 = vmatmul.f32.gmra.mxu0 %v1301
    %v1535 = vpop.f32.mrf.mxu0
    %v1536 = vadd.f32 %v1263, %v1535
    %1537 = vmatmul.f32.gmra.mxu0 %v1304
    %v1538 = vpop.f32.mrf.mxu0
    %v1539 = vadd.f32 %v1268, %v1538
    %1540 = vmatmul.f32.gmra.mxu0 %v1307
    %v1541 = vpop.f32.mrf.mxu0
    %v1542 = vadd.f32 %v1273, %v1541
    %1543 = vmatmul.f32.gmra.mxu0 %v1310
    %v1544 = vpop.f32.mrf.mxu0
    %v1545 = vadd.f32 %v1278, %v1544
    %1546 = vmatmul.f32.gmra.mxu0 %v1313
    %v1547 = vpop.f32.mrf.mxu0
    %v1548 = vadd.f32 %v1283, %v1547
    %1549 = vdwg.mxu0
    %1550 = vmatpush.msra.mxu0 0.0
    %1551 = vmatpush.msra.mxu0 0.0
    %1552 = vmatpush.msra.mxu0 0.0
    %1553 = vmatpush.msra.mxu0 0.0
    %1554 = vmatpush.msra.mxu0 0.0
    %1555 = vmatpush.msra.mxu0 0.0
    %1556 = vmatpush.msra.mxu0 %v1212
    %1557 = vmatpush.msra.mxu0 %v1204
    %1558 = vmatpush.msra.mxu0 %v1196
    %1559 = vmatpush.msra.mxu0 %v1188
    %1560 = vmatpush.msra.mxu0 %v1180
    %1561 = vmatpush.msra.mxu0 %v1172
    %1562 = vmatpush.msra.mxu0 %v1164
    %1563 = vmatpush.msra.mxu0 %v1156
    %1564 = vmatpush.msra.mxu0 %v1148
    %1565 = vmatpush.msra.mxu0 %v1140
    %1566 = vmatmul.f32.gmra.mxu0 %v1286
    %v1567 = vpop.f32.mrf.mxu0
    %v1568 = vadd.f32 %v1238, %v1567
    %1569 = vmatmul.f32.gmra.mxu0 %v1289
    %v1570 = vpop.f32.mrf.mxu0
    %v1571 = vadd.f32 %v1243, %v1570
    %1572 = vmatmul.f32.gmra.mxu0 %v1292
    %v1573 = vpop.f32.mrf.mxu0
    %v1574 = vadd.f32 %v1248, %v1573
    %1575 = vmatmul.f32.gmra.mxu0 %v1295
    %v1576 = vpop.f32.mrf.mxu0
    %v1577 = vadd.f32 %v1253, %v1576
    %1578 = vmatmul.f32.gmra.mxu0 %v1298
    %v1579 = vpop.f32.mrf.mxu0
    %v1580 = vadd.f32 %v1258, %v1579
    %1581 = vmatmul.f32.gmra.mxu0 %v1301
    %v1582 = vpop.f32.mrf.mxu0
    %v1583 = vadd.f32 %v1263, %v1582
    %1584 = vmatmul.f32.gmra.mxu0 %v1304
    %v1585 = vpop.f32.mrf.mxu0
    %v1586 = vadd.f32 %v1268, %v1585
    %1587 = vmatmul.f32.gmra.mxu0 %v1307
    %v1588 = vpop.f32.mrf.mxu0
    %v1589 = vadd.f32 %v1273, %v1588
    %1590 = vmatmul.f32.gmra.mxu0 %v1310
    %v1591 = vpop.f32.mrf.mxu0
    %v1592 = vadd.f32 %v1278, %v1591
    %1593 = vmatmul.f32.gmra.mxu0 %v1313
    %v1594 = vpop.f32.mrf.mxu0
    %v1595 = vadd.f32 %v1283, %v1594
    %1596 = vdwg.mxu0
    %1597 = vmatpush.msra.mxu0 0.0
    %1598 = vmatpush.msra.mxu0 0.0
    %1599 = vmatpush.msra.mxu0 0.0
    %1600 = vmatpush.msra.mxu0 0.0
    %1601 = vmatpush.msra.mxu0 0.0
    %1602 = vmatpush.msra.mxu0 0.0
    %1603 = vmatpush.msra.mxu0 %v1213
    %1604 = vmatpush.msra.mxu0 %v1205
    %1605 = vmatpush.msra.mxu0 %v1197
    %1606 = vmatpush.msra.mxu0 %v1189
    %1607 = vmatpush.msra.mxu0 %v1181
    %1608 = vmatpush.msra.mxu0 %v1173
    %1609 = vmatpush.msra.mxu0 %v1165
    %1610 = vmatpush.msra.mxu0 %v1157
    %1611 = vmatpush.msra.mxu0 %v1149
    %1612 = vmatpush.msra.mxu0 %v1141
    %1613 = vmatmul.f32.gmra.mxu0 %v1286
    %v1614 = vpop.f32.mrf.mxu0
    %v1615 = vadd.f32 %v1238, %v1614
    %1616 = vmatmul.f32.gmra.mxu0 %v1289
    %v1617 = vpop.f32.mrf.mxu0
    %v1618 = vadd.f32 %v1243, %v1617
    %1619 = vmatmul.f32.gmra.mxu0 %v1292
    %v1620 = vpop.f32.mrf.mxu0
    %v1621 = vadd.f32 %v1248, %v1620
    %1622 = vmatmul.f32.gmra.mxu0 %v1295
    %v1623 = vpop.f32.mrf.mxu0
    %v1624 = vadd.f32 %v1253, %v1623
    %1625 = vmatmul.f32.gmra.mxu0 %v1298
    %v1626 = vpop.f32.mrf.mxu0
    %v1627 = vadd.f32 %v1258, %v1626
    %1628 = vmatmul.f32.gmra.mxu0 %v1301
    %v1629 = vpop.f32.mrf.mxu0
    %v1630 = vadd.f32 %v1263, %v1629
    %1631 = vmatmul.f32.gmra.mxu0 %v1304
    %v1632 = vpop.f32.mrf.mxu0
    %v1633 = vadd.f32 %v1268, %v1632
    %1634 = vmatmul.f32.gmra.mxu0 %v1307
    %v1635 = vpop.f32.mrf.mxu0
    %v1636 = vadd.f32 %v1273, %v1635
    %1637 = vmatmul.f32.gmra.mxu0 %v1310
    %v1638 = vpop.f32.mrf.mxu0
    %v1639 = vadd.f32 %v1278, %v1638
    %1640 = vmatmul.f32.gmra.mxu0 %v1313
    %v1641 = vpop.f32.mrf.mxu0
    %v1642 = vadd.f32 %v1283, %v1641
    %1643 = vdwg.mxu0
    %1644 = vmatpush.msra.mxu0 0.0
    %1645 = vmatpush.msra.mxu0 0.0
    %1646 = vmatpush.msra.mxu0 0.0
    %1647 = vmatpush.msra.mxu0 0.0
    %1648 = vmatpush.msra.mxu0 0.0
    %1649 = vmatpush.msra.mxu0 0.0
    %1650 = vmatpush.msra.mxu0 %v1214
    %1651 = vmatpush.msra.mxu0 %v1206
    %1652 = vmatpush.msra.mxu0 %v1198
    %1653 = vmatpush.msra.mxu0 %v1190
    %1654 = vmatpush.msra.mxu0 %v1182
    %1655 = vmatpush.msra.mxu0 %v1174
    %1656 = vmatpush.msra.mxu0 %v1166
    %1657 = vmatpush.msra.mxu0 %v1158
    %1658 = vmatpush.msra.mxu0 %v1150
    %1659 = vmatpush.msra.mxu0 %v1142
    %1660 = vmatmul.f32.gmra.mxu0 %v1286
    %v1661 = vpop.f32.mrf.mxu0
    %v1662 = vadd.f32 %v1238, %v1661
    %1663 = vmatmul.f32.gmra.mxu0 %v1289
    %v1664 = vpop.f32.mrf.mxu0
    %v1665 = vadd.f32 %v1243, %v1664
    %1666 = vmatmul.f32.gmra.mxu0 %v1292
    %v1667 = vpop.f32.mrf.mxu0
    %v1668 = vadd.f32 %v1248, %v1667
    %1669 = vmatmul.f32.gmra.mxu0 %v1295
    %v1670 = vpop.f32.mrf.mxu0
    %v1671 = vadd.f32 %v1253, %v1670
    %1672 = vmatmul.f32.gmra.mxu0 %v1298
    %v1673 = vpop.f32.mrf.mxu0
    %v1674 = vadd.f32 %v1258, %v1673
    %1675 = vmatmul.f32.gmra.mxu0 %v1301
    %v1676 = vpop.f32.mrf.mxu0
    %v1677 = vadd.f32 %v1263, %v1676
    %1678 = vmatmul.f32.gmra.mxu0 %v1304
    %v1679 = vpop.f32.mrf.mxu0
    %v1680 = vadd.f32 %v1268, %v1679
    %1681 = vmatmul.f32.gmra.mxu0 %v1307
    %v1682 = vpop.f32.mrf.mxu0
    %v1683 = vadd.f32 %v1273, %v1682
    %1684 = vmatmul.f32.gmra.mxu0 %v1310
    %v1685 = vpop.f32.mrf.mxu0
    %v1686 = vadd.f32 %v1278, %v1685
    %1687 = vmatmul.f32.gmra.mxu0 %v1313
    %v1688 = vpop.f32.mrf.mxu0
    %v1689 = vadd.f32 %v1283, %v1688
    %1690 = vdwg.mxu0
    %v1691 = vtanh.pop %v1333
    %v1692 = vtanh.pop %v1380
    %v1693 = vtanh.pop %v1427
    %v1694 = vtanh.pop %v1474
    %v1695 = vtanh.pop %v1521
    %v1696 = vtanh.pop %v1568
    %v1697 = vtanh.pop %v1615
    %v1698 = vtanh.pop %v1662
    %v1699 = vtanh.pop %v1336
    %v1700 = vtanh.pop %v1383
    %v1701 = vtanh.pop %v1430
    %v1702 = vtanh.pop %v1477
    %v1703 = vtanh.pop %v1524
    %v1704 = vtanh.pop %v1571
    %v1705 = vtanh.pop %v1618
    %v1706 = vtanh.pop %v1665
    %v1707 = vtanh.pop %v1339
    %v1708 = vtanh.pop %v1386
    %v1709 = vtanh.pop %v1433
    %v1710 = vtanh.pop %v1480
    %v1711 = vtanh.pop %v1527
    %v1712 = vtanh.pop %v1574
    %v1713 = vtanh.pop %v1621
    %v1714 = vtanh.pop %v1668
    %v1715 = vtanh.pop %v1342
    %v1716 = vtanh.pop %v1389
    %v1717 = vtanh.pop %v1436
    %v1718 = vtanh.pop %v1483
    %v1719 = vtanh.pop %v1530
    %v1720 = vtanh.pop %v1577
    %v1721 = vtanh.pop %v1624
    %v1722 = vtanh.pop %v1671
    %v1723 = vtanh.pop %v1345
    %v1724 = vtanh.pop %v1392
    %v1725 = vtanh.pop %v1439
    %v1726 = vtanh.pop %v1486
    %v1727 = vtanh.pop %v1533
    %v1728 = vtanh.pop %v1580
    %v1729 = vtanh.pop %v1627
    %v1730 = vtanh.pop %v1674
    %v1731 = vtanh.pop %v1348
    %v1732 = vtanh.pop %v1395
    %v1733 = vtanh.pop %v1442
    %v1734 = vtanh.pop %v1489
    %v1735 = vtanh.pop %v1536
    %v1736 = vtanh.pop %v1583
    %v1737 = vtanh.pop %v1630
    %v1738 = vtanh.pop %v1677
    %v1739 = vtanh.pop %v1351
    %v1740 = vtanh.pop %v1398
    %v1741 = vtanh.pop %v1445
    %v1742 = vtanh.pop %v1492
    %v1743 = vtanh.pop %v1539
    %v1744 = vtanh.pop %v1586
    %v1745 = vtanh.pop %v1633
    %v1746 = vtanh.pop %v1680
    %v1747 = vtanh.pop %v1354
    %v1748 = vtanh.pop %v1401
    %v1749 = vtanh.pop %v1448
    %v1750 = vtanh.pop %v1495
    %v1751 = vtanh.pop %v1542
    %v1752 = vtanh.pop %v1589
    %v1753 = vtanh.pop %v1636
    %v1754 = vtanh.pop %v1683
    %v1755 = vtanh.pop %v1357
    %v1756 = vtanh.pop %v1404
    %v1757 = vtanh.pop %v1451
    %v1758 = vtanh.pop %v1498
    %v1759 = vtanh.pop %v1545
    %v1760 = vtanh.pop %v1592
    %v1761 = vtanh.pop %v1639
    %v1762 = vtanh.pop %v1686
    %v1763 = vtanh.pop %v1360
    %v1764 = vtanh.pop %v1407
    %v1765 = vtanh.pop %v1454
    %v1766 = vtanh.pop %v1501
    %v1767 = vtanh.pop %v1548
    %v1768 = vtanh.pop %v1595
    %v1769 = vtanh.pop %v1642
    %v1770 = vtanh.pop %v1689
    %v1771 = vld [vmem:[%s7] sm:$0xff]
    %v1772 = vld [vmem:[%s7 + $0x8] sm:$0xff]
    %v1773 = vld [vmem:[%s7 + $0x10] sm:$0xff]
    %v1774 = vld [vmem:[%s7 + $0x18] sm:$0xff]
    %v1775 = vld [vmem:[%s7 + $0x20] sm:$0xff]
    %v1776 = vld [vmem:[%s7 + $0x28] sm:$0xff]
    %v1777 = vld [vmem:[%s7 + $0x30] sm:$0xff]
    %v1778 = vld [vmem:[%s7 + $0x38] sm:$0xff]
    %v1779 = vld [vmem:[%s7 + $0x40] sm:$0xff]
    %v1780 = vld [vmem:[%s7 + $0x48] sm:$0xff]
    %v1781 = vld [vmem:[%s8] sm:$0xff]
    %v1782 = vld [vmem:[%s8 + $0x8] sm:$0xff]
    %v1783 = vld [vmem:[%s8 + $0x10] sm:$0xff]
    %v1784 = vld [vmem:[%s8 + $0x18] sm:$0xff]
    %v1785 = vld [vmem:[%s8 + $0x20] sm:$0xff]
    %v1786 = vld [vmem:[%s8 + $0x28] sm:$0xff]
    %v1787 = vld [vmem:[%s8 + $0x30] sm:$0xff]
    %v1788 = vld [vmem:[%s8 + $0x38] sm:$0xff]
    %v1789 = vld [vmem:[%s8 + $0x40] sm:$0xff]
    %v1790 = vld [vmem:[%s8 + $0x48] sm:$0xff]
    %1792 = vset.pattern.permute.xlu0 0
    %1793 = vperm.xlu0 %1792, %v1781
    %v1794 = vpop.permute.xlu0 %1793
    %1797 = vset.pattern.permute.xlu0 0
    %1798 = vperm.xlu0 %1797, %v1782
    %v1799 = vpop.permute.xlu0 %1798
    %1802 = vset.pattern.permute.xlu0 0
    %1803 = vperm.xlu0 %1802, %v1783
    %v1804 = vpop.permute.xlu0 %1803
    %1807 = vset.pattern.permute.xlu0 0
    %1808 = vperm.xlu0 %1807, %v1784
    %v1809 = vpop.permute.xlu0 %1808
    %1812 = vset.pattern.permute.xlu0 0
    %1813 = vperm.xlu0 %1812, %v1785
    %v1814 = vpop.permute.xlu0 %1813
    %1817 = vset.pattern.permute.xlu0 0
    %1818 = vperm.xlu0 %1817, %v1786
    %v1819 = vpop.permute.xlu0 %1818
    %1822 = vset.pattern.permute.xlu0 0
    %1823 = vperm.xlu0 %1822, %v1787
    %v1824 = vpop.permute.xlu0 %1823
    %1827 = vset.pattern.permute.xlu0 0
    %1828 = vperm.xlu0 %1827, %v1788
    %v1829 = vpop.permute.xlu0 %1828
    %1832 = vset.pattern.permute.xlu0 0
    %1833 = vperm.xlu0 %1832, %v1789
    %v1834 = vpop.permute.xlu0 %1833
    %1837 = vset.pattern.permute.xlu0 0
    %1838 = vperm.xlu0 %1837, %v1790
    %v1839 = vpop.permute.xlu0 %1838
    %v1842 = vsel %vm728, %v1771, 0
    %v1845 = vsel %vm728, %v1772, 0
    %v1848 = vsel %vm728, %v1773, 0
    %v1851 = vsel %vm728, %v1774, 0
    %v1854 = vsel %vm728, %v1775, 0
    %v1857 = vsel %vm728, %v1776, 0
    %v1860 = vsel %vm728, %v1777, 0
    %v1863 = vsel %vm728, %v1778, 0
    %v1866 = vsel %vm728, %v1779, 0
    %v1869 = vsel %vm728, %v1780, 0
    %1871 = vmatpush.msra.mxu0 0.0
    %1872 = vmatpush.msra.mxu0 0.0
    %1873 = vmatpush.msra.mxu0 0.0
    %1874 = vmatpush.msra.mxu0 0.0
    %1875 = vmatpush.msra.mxu0 0.0
    %1876 = vmatpush.msra.mxu0 0.0
    %1877 = vmatpush.msra.mxu0 %v1763
    %1878 = vmatpush.msra.mxu0 %v1755
    %1879 = vmatpush.msra.mxu0 %v1747
    %1880 = vmatpush.msra.mxu0 %v1739
    %1881 = vmatpush.msra.mxu0 %v1731
    %1882 = vmatpush.msra.mxu0 %v1723
    %1883 = vmatpush.msra.mxu0 %v1715
    %1884 = vmatpush.msra.mxu0 %v1707
    %1885 = vmatpush.msra.mxu0 %v1699
    %1886 = vmatpush.msra.mxu0 %v1691
    %1887 = vmatmul.f32.gmra.mxu0 %v1842
    %v1888 = vpop.f32.mrf.mxu0
    %v1889 = vadd.f32 %v1794, %v1888
    %1890 = vmatmul.f32.gmra.mxu0 %v1845
    %v1891 = vpop.f32.mrf.mxu0
    %v1892 = vadd.f32 %v1799, %v1891
    %1893 = vmatmul.f32.gmra.mxu0 %v1848
    %v1894 = vpop.f32.mrf.mxu0
    %v1895 = vadd.f32 %v1804, %v1894
    %1896 = vmatmul.f32.gmra.mxu0 %v1851
    %v1897 = vpop.f32.mrf.mxu0
    %v1898 = vadd.f32 %v1809, %v1897
    %1899 = vmatmul.f32.gmra.mxu0 %v1854
    %v1900 = vpop.f32.mrf.mxu0
    %v1901 = vadd.f32 %v1814, %v1900
    %1902 = vmatmul.f32.gmra.mxu0 %v1857
    %v1903 = vpop.f32.mrf.mxu0
    %v1904 = vadd.f32 %v1819, %v1903
    %1905 = vmatmul.f32.gmra.mxu0 %v1860
    %v1906 = vpop.f32.mrf.mxu0
    %v1907 = vadd.f32 %v1824, %v1906
    %1908 = vmatmul.f32.gmra.mxu0 %v1863
    %v1909 = vpop.f32.mrf.mxu0
    %v1910 = vadd.f32 %v1829, %v1909
    %1911 = vmatmul.f32.gmra.mxu0 %v1866
    %v1912 = vpop.f32.mrf.mxu0
    %v1913 = vadd.f32 %v1834, %v1912
    %1914 = vmatmul.f32.gmra.mxu0 %v1869
    %v1915 = vpop.f32.mrf.mxu0
    %v1916 = vadd.f32 %v1839, %v1915
    %1917 = vdwg.mxu0
    %1918 = vmatpush.msra.mxu0 0.0
    %1919 = vmatpush.msra.mxu0 0.0
    %1920 = vmatpush.msra.mxu0 0.0
    %1921 = vmatpush.msra.mxu0 0.0
    %1922 = vmatpush.msra.mxu0 0.0
    %1923 = vmatpush.msra.mxu0 0.0
    %1924 = vmatpush.msra.mxu0 %v1764
    %1925 = vmatpush.msra.mxu0 %v1756
    %1926 = vmatpush.msra.mxu0 %v1748
    %1927 = vmatpush.msra.mxu0 %v1740
    %1928 = vmatpush.msra.mxu0 %v1732
    %1929 = vmatpush.msra.mxu0 %v1724
    %1930 = vmatpush.msra.mxu0 %v1716
    %1931 = vmatpush.msra.mxu0 %v1708
    %1932 = vmatpush.msra.mxu0 %v1700
    %1933 = vmatpush.msra.mxu0 %v1692
    %1934 = vmatmul.f32.gmra.mxu0 %v1842
    %v1935 = vpop.f32.mrf.mxu0
    %v1936 = vadd.f32 %v1794, %v1935
    %1937 = vmatmul.f32.gmra.mxu0 %v1845
    %v1938 = vpop.f32.mrf.mxu0
    %v1939 = vadd.f32 %v1799, %v1938
    %1940 = vmatmul.f32.gmra.mxu0 %v1848
    %v1941 = vpop.f32.mrf.mxu0
    %v1942 = vadd.f32 %v1804, %v1941
    %1943 = vmatmul.f32.gmra.mxu0 %v1851
    %v1944 = vpop.f32.mrf.mxu0
    %v1945 = vadd.f32 %v1809, %v1944
    %1946 = vmatmul.f32.gmra.mxu0 %v1854
    %v1947 = vpop.f32.mrf.mxu0
    %v1948 = vadd.f32 %v1814, %v1947
    %1949 = vmatmul.f32.gmra.mxu0 %v1857
    %v1950 = vpop.f32.mrf.mxu0
    %v1951 = vadd.f32 %v1819, %v1950
    %1952 = vmatmul.f32.gmra.mxu0 %v1860
    %v1953 = vpop.f32.mrf.mxu0
    %v1954 = vadd.f32 %v1824, %v1953
    %1955 = vmatmul.f32.gmra.mxu0 %v1863
    %v1956 = vpop.f32.mrf.mxu0
    %v1957 = vadd.f32 %v1829, %v1956
    %1958 = vmatmul.f32.gmra.mxu0 %v1866
    %v1959 = vpop.f32.mrf.mxu0
    %v1960 = vadd.f32 %v1834, %v1959
    %1961 = vmatmul.f32.gmra.mxu0 %v1869
    %v1962 = vpop.f32.mrf.mxu0
    %v1963 = vadd.f32 %v1839, %v1962
    %1964 = vdwg.mxu0
    %1965 = vmatpush.msra.mxu0 0.0
    %1966 = vmatpush.msra.mxu0 0.0
    %1967 = vmatpush.msra.mxu0 0.0
    %1968 = vmatpush.msra.mxu0 0.0
    %1969 = vmatpush.msra.mxu0 0.0
    %1970 = vmatpush.msra.mxu0 0.0
    %1971 = vmatpush.msra.mxu0 %v1765
    %1972 = vmatpush.msra.mxu0 %v1757
    %1973 = vmatpush.msra.mxu0 %v1749
    %1974 = vmatpush.msra.mxu0 %v1741
    %1975 = vmatpush.msra.mxu0 %v1733
    %1976 = vmatpush.msra.mxu0 %v1725
    %1977 = vmatpush.msra.mxu0 %v1717
    %1978 = vmatpush.msra.mxu0 %v1709
    %1979 = vmatpush.msra.mxu0 %v1701
    %1980 = vmatpush.msra.mxu0 %v1693
    %1981 = vmatmul.f32.gmra.mxu0 %v1842
    %v1982 = vpop.f32.mrf.mxu0
    %v1983 = vadd.f32 %v1794, %v1982
    %1984 = vmatmul.f32.gmra.mxu0 %v1845
    %v1985 = vpop.f32.mrf.mxu0
    %v1986 = vadd.f32 %v1799, %v1985
    %1987 = vmatmul.f32.gmra.mxu0 %v1848
    %v1988 = vpop.f32.mrf.mxu0
    %v1989 = vadd.f32 %v1804, %v1988
    %1990 = vmatmul.f32.gmra.mxu0 %v1851
    %v1991 = vpop.f32.mrf.mxu0
    %v1992 = vadd.f32 %v1809, %v1991
    %1993 = vmatmul.f32.gmra.mxu0 %v1854
    %v1994 = vpop.f32.mrf.mxu0
    %v1995 = vadd.f32 %v1814, %v1994
    %1996 = vmatmul.f32.gmra.mxu0 %v1857
    %v1997 = vpop.f32.mrf.mxu0
    %v1998 = vadd.f32 %v1819, %v1997
    %1999 = vmatmul.f32.gmra.mxu0 %v1860
    %v2000 = vpop.f32.mrf.mxu0
    %v2001 = vadd.f32 %v1824, %v2000
    %2002 = vmatmul.f32.gmra.mxu0 %v1863
    %v2003 = vpop.f32.mrf.mxu0
    %v2004 = vadd.f32 %v1829, %v2003
    %2005 = vmatmul.f32.gmra.mxu0 %v1866
    %v2006 = vpop.f32.mrf.mxu0
    %v2007 = vadd.f32 %v1834, %v2006
    %2008 = vmatmul.f32.gmra.mxu0 %v1869
    %v2009 = vpop.f32.mrf.mxu0
    %v2010 = vadd.f32 %v1839, %v2009
    %2011 = vdwg.mxu0
    %2012 = vmatpush.msra.mxu0 0.0
    %2013 = vmatpush.msra.mxu0 0.0
    %2014 = vmatpush.msra.mxu0 0.0
    %2015 = vmatpush.msra.mxu0 0.0
    %2016 = vmatpush.msra.mxu0 0.0
    %2017 = vmatpush.msra.mxu0 0.0
    %2018 = vmatpush.msra.mxu0 %v1766
    %2019 = vmatpush.msra.mxu0 %v1758
    %2020 = vmatpush.msra.mxu0 %v1750
    %2021 = vmatpush.msra.mxu0 %v1742
    %2022 = vmatpush.msra.mxu0 %v1734
    %2023 = vmatpush.msra.mxu0 %v1726
    %2024 = vmatpush.msra.mxu0 %v1718
    %2025 = vmatpush.msra.mxu0 %v1710
    %2026 = vmatpush.msra.mxu0 %v1702
    %2027 = vmatpush.msra.mxu0 %v1694
    %2028 = vmatmul.f32.gmra.mxu0 %v1842
    %v2029 = vpop.f32.mrf.mxu0
    %v2030 = vadd.f32 %v1794, %v2029
    %2031 = vmatmul.f32.gmra.mxu0 %v1845
    %v2032 = vpop.f32.mrf.mxu0
    %v2033 = vadd.f32 %v1799, %v2032
    %2034 = vmatmul.f32.gmra.mxu0 %v1848
    %v2035 = vpop.f32.mrf.mxu0
    %v2036 = vadd.f32 %v1804, %v2035
    %2037 = vmatmul.f32.gmra.mxu0 %v1851
    %v2038 = vpop.f32.mrf.mxu0
    %v2039 = vadd.f32 %v1809, %v2038
    %2040 = vmatmul.f32.gmra.mxu0 %v1854
    %v2041 = vpop.f32.mrf.mxu0
    %v2042 = vadd.f32 %v1814, %v2041
    %2043 = vmatmul.f32.gmra.mxu0 %v1857
    %v2044 = vpop.f32.mrf.mxu0
    %v2045 = vadd.f32 %v1819, %v2044
    %2046 = vmatmul.f32.gmra.mxu0 %v1860
    %v2047 = vpop.f32.mrf.mxu0
    %v2048 = vadd.f32 %v1824, %v2047
    %2049 = vmatmul.f32.gmra.mxu0 %v1863
    %v2050 = vpop.f32.mrf.mxu0
    %v2051 = vadd.f32 %v1829, %v2050
    %2052 = vmatmul.f32.gmra.mxu0 %v1866
    %v2053 = vpop.f32.mrf.mxu0
    %v2054 = vadd.f32 %v1834, %v2053
    %2055 = vmatmul.f32.gmra.mxu0 %v1869
    %v2056 = vpop.f32.mrf.mxu0
    %v2057 = vadd.f32 %v1839, %v2056
    %2058 = vdwg.mxu0
    %2059 = vmatpush.msra.mxu0 0.0
    %2060 = vmatpush.msra.mxu0 0.0
    %2061 = vmatpush.msra.mxu0 0.0
    %2062 = vmatpush.msra.mxu0 0.0
    %2063 = vmatpush.msra.mxu0 0.0
    %2064 = vmatpush.msra.mxu0 0.0
    %2065 = vmatpush.msra.mxu0 %v1767
    %2066 = vmatpush.msra.mxu0 %v1759
    %2067 = vmatpush.msra.mxu0 %v1751
    %2068 = vmatpush.msra.mxu0 %v1743
    %2069 = vmatpush.msra.mxu0 %v1735
    %2070 = vmatpush.msra.mxu0 %v1727
    %2071 = vmatpush.msra.mxu0 %v1719
    %2072 = vmatpush.msra.mxu0 %v1711
    %2073 = vmatpush.msra.mxu0 %v1703
    %2074 = vmatpush.msra.mxu0 %v1695
    %2075 = vmatmul.f32.gmra.mxu0 %v1842
    %v2076 = vpop.f32.mrf.mxu0
    %v2077 = vadd.f32 %v1794, %v2076
    %2078 = vmatmul.f32.gmra.mxu0 %v1845
    %v2079 = vpop.f32.mrf.mxu0
    %v2080 = vadd.f32 %v1799, %v2079
    %2081 = vmatmul.f32.gmra.mxu0 %v1848
    %v2082 = vpop.f32.mrf.mxu0
    %v2083 = vadd.f32 %v1804, %v2082
    %2084 = vmatmul.f32.gmra.mxu0 %v1851
    %v2085 = vpop.f32.mrf.mxu0
    %v2086 = vadd.f32 %v1809, %v2085
    %2087 = vmatmul.f32.gmra.mxu0 %v1854
    %v2088 = vpop.f32.mrf.mxu0
    %v2089 = vadd.f32 %v1814, %v2088
    %2090 = vmatmul.f32.gmra.mxu0 %v1857
    %v2091 = vpop.f32.mrf.mxu0
    %v2092 = vadd.f32 %v1819, %v2091
    %2093 = vmatmul.f32.gmra.mxu0 %v1860
    %v2094 = vpop.f32.mrf.mxu0
    %v2095 = vadd.f32 %v1824, %v2094
    %2096 = vmatmul.f32.gmra.mxu0 %v1863
    %v2097 = vpop.f32.mrf.mxu0
    %v2098 = vadd.f32 %v1829, %v2097
    %2099 = vmatmul.f32.gmra.mxu0 %v1866
    %v2100 = vpop.f32.mrf.mxu0
    %v2101 = vadd.f32 %v1834, %v2100
    %2102 = vmatmul.f32.gmra.mxu0 %v1869
    %v2103 = vpop.f32.mrf.mxu0
    %v2104 = vadd.f32 %v1839, %v2103
    %2105 = vdwg.mxu0
    %2106 = vmatpush.msra.mxu0 0.0
    %2107 = vmatpush.msra.mxu0 0.0
    %2108 = vmatpush.msra.mxu0 0.0
    %2109 = vmatpush.msra.mxu0 0.0
    %2110 = vmatpush.msra.mxu0 0.0
    %2111 = vmatpush.msra.mxu0 0.0
    %2112 = vmatpush.msra.mxu0 %v1768
    %2113 = vmatpush.msra.mxu0 %v1760
    %2114 = vmatpush.msra.mxu0 %v1752
    %2115 = vmatpush.msra.mxu0 %v1744
    %2116 = vmatpush.msra.mxu0 %v1736
    %2117 = vmatpush.msra.mxu0 %v1728
    %2118 = vmatpush.msra.mxu0 %v1720
    %2119 = vmatpush.msra.mxu0 %v1712
    %2120 = vmatpush.msra.mxu0 %v1704
    %2121 = vmatpush.msra.mxu0 %v1696
    %2122 = vmatmul.f32.gmra.mxu0 %v1842
    %v2123 = vpop.f32.mrf.mxu0
    %v2124 = vadd.f32 %v1794, %v2123
    %2125 = vmatmul.f32.gmra.mxu0 %v1845
    %v2126 = vpop.f32.mrf.mxu0
    %v2127 = vadd.f32 %v1799, %v2126
    %2128 = vmatmul.f32.gmra.mxu0 %v1848
    %v2129 = vpop.f32.mrf.mxu0
    %v2130 = vadd.f32 %v1804, %v2129
    %2131 = vmatmul.f32.gmra.mxu0 %v1851
    %v2132 = vpop.f32.mrf.mxu0
    %v2133 = vadd.f32 %v1809, %v2132
    %2134 = vmatmul.f32.gmra.mxu0 %v1854
    %v2135 = vpop.f32.mrf.mxu0
    %v2136 = vadd.f32 %v1814, %v2135
    %2137 = vmatmul.f32.gmra.mxu0 %v1857
    %v2138 = vpop.f32.mrf.mxu0
    %v2139 = vadd.f32 %v1819, %v2138
    %2140 = vmatmul.f32.gmra.mxu0 %v1860
    %v2141 = vpop.f32.mrf.mxu0
    %v2142 = vadd.f32 %v1824, %v2141
    %2143 = vmatmul.f32.gmra.mxu0 %v1863
    %v2144 = vpop.f32.mrf.mxu0
    %v2145 = vadd.f32 %v1829, %v2144
    %2146 = vmatmul.f32.gmra.mxu0 %v1866
    %v2147 = vpop.f32.mrf.mxu0
    %v2148 = vadd.f32 %v1834, %v2147
    %2149 = vmatmul.f32.gmra.mxu0 %v1869
    %v2150 = vpop.f32.mrf.mxu0
    %v2151 = vadd.f32 %v1839, %v2150
    %2152 = vdwg.mxu0
    %2153 = vmatpush.msra.mxu0 0.0
    %2154 = vmatpush.msra.mxu0 0.0
    %2155 = vmatpush.msra.mxu0 0.0
    %2156 = vmatpush.msra.mxu0 0.0
    %2157 = vmatpush.msra.mxu0 0.0
    %2158 = vmatpush.msra.mxu0 0.0
    %2159 = vmatpush.msra.mxu0 %v1769
    %2160 = vmatpush.msra.mxu0 %v1761
    %2161 = vmatpush.msra.mxu0 %v1753
    %2162 = vmatpush.msra.mxu0 %v1745
    %2163 = vmatpush.msra.mxu0 %v1737
    %2164 = vmatpush.msra.mxu0 %v1729
    %2165 = vmatpush.msra.mxu0 %v1721
    %2166 = vmatpush.msra.mxu0 %v1713
    %2167 = vmatpush.msra.mxu0 %v1705
    %2168 = vmatpush.msra.mxu0 %v1697
    %2169 = vmatmul.f32.gmra.mxu0 %v1842
    %v2170 = vpop.f32.mrf.mxu0
    %v2171 = vadd.f32 %v1794, %v2170
    %2172 = vmatmul.f32.gmra.mxu0 %v1845
    %v2173 = vpop.f32.mrf.mxu0
    %v2174 = vadd.f32 %v1799, %v2173
    %2175 = vmatmul.f32.gmra.mxu0 %v1848
    %v2176 = vpop.f32.mrf.mxu0
    %v2177 = vadd.f32 %v1804, %v2176
    %2178 = vmatmul.f32.gmra.mxu0 %v1851
    %v2179 = vpop.f32.mrf.mxu0
    %v2180 = vadd.f32 %v1809, %v2179
    %2181 = vmatmul.f32.gmra.mxu0 %v1854
    %v2182 = vpop.f32.mrf.mxu0
    %v2183 = vadd.f32 %v1814, %v2182
    %2184 = vmatmul.f32.gmra.mxu0 %v1857
    %v2185 = vpop.f32.mrf.mxu0
    %v2186 = vadd.f32 %v1819, %v2185
    %2187 = vmatmul.f32.gmra.mxu0 %v1860
    %v2188 = vpop.f32.mrf.mxu0
    %v2189 = vadd.f32 %v1824, %v2188
    %2190 = vmatmul.f32.gmra.mxu0 %v1863
    %v2191 = vpop.f32.mrf.mxu0
    %v2192 = vadd.f32 %v1829, %v2191
    %2193 = vmatmul.f32.gmra.mxu0 %v1866
    %v2194 = vpop.f32.mrf.mxu0
    %v2195 = vadd.f32 %v1834, %v2194
    %2196 = vmatmul.f32.gmra.mxu0 %v1869
    %v2197 = vpop.f32.mrf.mxu0
    %v2198 = vadd.f32 %v1839, %v2197
    %2199 = vdwg.mxu0
    %2200 = vmatpush.msra.mxu0 0.0
    %2201 = vmatpush.msra.mxu0 0.0
    %2202 = vmatpush.msra.mxu0 0.0
    %2203 = vmatpush.msra.mxu0 0.0
    %2204 = vmatpush.msra.mxu0 0.0
    %2205 = vmatpush.msra.mxu0 0.0
    %2206 = vmatpush.msra.mxu0 %v1770
    %2207 = vmatpush.msra.mxu0 %v1762
    %2208 = vmatpush.msra.mxu0 %v1754
    %2209 = vmatpush.msra.mxu0 %v1746
    %2210 = vmatpush.msra.mxu0 %v1738
    %2211 = vmatpush.msra.mxu0 %v1730
    %2212 = vmatpush.msra.mxu0 %v1722
    %2213 = vmatpush.msra.mxu0 %v1714
    %2214 = vmatpush.msra.mxu0 %v1706
    %2215 = vmatpush.msra.mxu0 %v1698
    %2216 = vmatmul.f32.gmra.mxu0 %v1842
    %v2217 = vpop.f32.mrf.mxu0
    %v2218 = vadd.f32 %v1794, %v2217
    %2219 = vmatmul.f32.gmra.mxu0 %v1845
    %v2220 = vpop.f32.mrf.mxu0
    %v2221 = vadd.f32 %v1799, %v2220
    %2222 = vmatmul.f32.gmra.mxu0 %v1848
    %v2223 = vpop.f32.mrf.mxu0
    %v2224 = vadd.f32 %v1804, %v2223
    %2225 = vmatmul.f32.gmra.mxu0 %v1851
    %v2226 = vpop.f32.mrf.mxu0
    %v2227 = vadd.f32 %v1809, %v2226
    %2228 = vmatmul.f32.gmra.mxu0 %v1854
    %v2229 = vpop.f32.mrf.mxu0
    %v2230 = vadd.f32 %v1814, %v2229
    %2231 = vmatmul.f32.gmra.mxu0 %v1857
    %v2232 = vpop.f32.mrf.mxu0
    %v2233 = vadd.f32 %v1819, %v2232
    %2234 = vmatmul.f32.gmra.mxu0 %v1860
    %v2235 = vpop.f32.mrf.mxu0
    %v2236 = vadd.f32 %v1824, %v2235
    %2237 = vmatmul.f32.gmra.mxu0 %v1863
    %v2238 = vpop.f32.mrf.mxu0
    %v2239 = vadd.f32 %v1829, %v2238
    %2240 = vmatmul.f32.gmra.mxu0 %v1866
    %v2241 = vpop.f32.mrf.mxu0
    %v2242 = vadd.f32 %v1834, %v2241
    %2243 = vmatmul.f32.gmra.mxu0 %v1869
    %v2244 = vpop.f32.mrf.mxu0
    %v2245 = vadd.f32 %v1839, %v2244
    %2246 = vdwg.mxu0
    %v2247 = vtanh.pop %v1889
    %v2248 = vtanh.pop %v1936
    %v2249 = vtanh.pop %v1983
    %v2250 = vtanh.pop %v2030
    %v2251 = vtanh.pop %v2077
    %v2252 = vtanh.pop %v2124
    %v2253 = vtanh.pop %v2171
    %v2254 = vtanh.pop %v2218
    %v2255 = vtanh.pop %v1892
    %v2256 = vtanh.pop %v1939
    %v2257 = vtanh.pop %v1986
    %v2258 = vtanh.pop %v2033
    %v2259 = vtanh.pop %v2080
    %v2260 = vtanh.pop %v2127
    %v2261 = vtanh.pop %v2174
    %v2262 = vtanh.pop %v2221
    %v2263 = vtanh.pop %v1895
    %v2264 = vtanh.pop %v1942
    %v2265 = vtanh.pop %v1989
    %v2266 = vtanh.pop %v2036
    %v2267 = vtanh.pop %v2083
    %v2268 = vtanh.pop %v2130
    %v2269 = vtanh.pop %v2177
    %v2270 = vtanh.pop %v2224
    %v2271 = vtanh.pop %v1898
    %v2272 = vtanh.pop %v1945
    %v2273 = vtanh.pop %v1992
    %v2274 = vtanh.pop %v2039
    %v2275 = vtanh.pop %v2086
    %v2276 = vtanh.pop %v2133
    %v2277 = vtanh.pop %v2180
    %v2278 = vtanh.pop %v2227
    %v2279 = vtanh.pop %v1901
    %v2280 = vtanh.pop %v1948
    %v2281 = vtanh.pop %v1995
    %v2282 = vtanh.pop %v2042
    %v2283 = vtanh.pop %v2089
    %v2284 = vtanh.pop %v2136
    %v2285 = vtanh.pop %v2183
    %v2286 = vtanh.pop %v2230
    %v2287 = vtanh.pop %v1904
    %v2288 = vtanh.pop %v1951
    %v2289 = vtanh.pop %v1998
    %v2290 = vtanh.pop %v2045
    %v2291 = vtanh.pop %v2092
    %v2292 = vtanh.pop %v2139
    %v2293 = vtanh.pop %v2186
    %v2294 = vtanh.pop %v2233
    %v2295 = vtanh.pop %v1907
    %v2296 = vtanh.pop %v1954
    %v2297 = vtanh.pop %v2001
    %v2298 = vtanh.pop %v2048
    %v2299 = vtanh.pop %v2095
    %v2300 = vtanh.pop %v2142
    %v2301 = vtanh.pop %v2189
    %v2302 = vtanh.pop %v2236
    %v2303 = vtanh.pop %v1910
    %v2304 = vtanh.pop %v1957
    %v2305 = vtanh.pop %v2004
    %v2306 = vtanh.pop %v2051
    %v2307 = vtanh.pop %v2098
    %v2308 = vtanh.pop %v2145
    %v2309 = vtanh.pop %v2192
    %v2310 = vtanh.pop %v2239
    %v2311 = vtanh.pop %v1913
    %v2312 = vtanh.pop %v1960
    %v2313 = vtanh.pop %v2007
    %v2314 = vtanh.pop %v2054
    %v2315 = vtanh.pop %v2101
    %v2316 = vtanh.pop %v2148
    %v2317 = vtanh.pop %v2195
    %v2318 = vtanh.pop %v2242
    %v2319 = vtanh.pop %v1916
    %v2320 = vtanh.pop %v1963
    %v2321 = vtanh.pop %v2010
    %v2322 = vtanh.pop %v2057
    %v2323 = vtanh.pop %v2104
    %v2324 = vtanh.pop %v2151
    %v2325 = vtanh.pop %v2198
    %v2326 = vtanh.pop %v2245
    %v2327 = vld [vmem:[%s9] sm:$0xff]
    %v2328 = vld [vmem:[%s9 + $0x8] sm:$0xff]
    %v2329 = vld [vmem:[%s9 + $0x10] sm:$0xff]
    %v2330 = vld [vmem:[%s9 + $0x18] sm:$0xff]
    %v2331 = vld [vmem:[%s9 + $0x20] sm:$0xff]
    %v2332 = vld [vmem:[%s9 + $0x28] sm:$0xff]
    %v2333 = vld [vmem:[%s9 + $0x30] sm:$0xff]
    %v2334 = vld [vmem:[%s9 + $0x38] sm:$0xff]
    %v2335 = vld [vmem:[%s9 + $0x40] sm:$0xff]
    %v2336 = vld [vmem:[%s9 + $0x48] sm:$0xff]
    %2338 = vset.pattern.permute.xlu0 0
    %2339 = vperm.xlu0 %2338, %v2327
    %v2340 = vpop.permute.xlu0 %2339
    %2343 = vset.pattern.permute.xlu0 0
    %2344 = vperm.xlu0 %2343, %v2328
    %v2345 = vpop.permute.xlu0 %2344
    %2348 = vset.pattern.permute.xlu0 0
    %2349 = vperm.xlu0 %2348, %v2329
    %v2350 = vpop.permute.xlu0 %2349
    %2353 = vset.pattern.permute.xlu0 0
    %2354 = vperm.xlu0 %2353, %v2330
    %v2355 = vpop.permute.xlu0 %2354
    %2358 = vset.pattern.permute.xlu0 0
    %2359 = vperm.xlu0 %2358, %v2331
    %v2360 = vpop.permute.xlu0 %2359
    %2363 = vset.pattern.permute.xlu0 0
    %2364 = vperm.xlu0 %2363, %v2332
    %v2365 = vpop.permute.xlu0 %2364
    %2368 = vset.pattern.permute.xlu0 0
    %2369 = vperm.xlu0 %2368, %v2333
    %v2370 = vpop.permute.xlu0 %2369
    %2373 = vset.pattern.permute.xlu0 0
    %2374 = vperm.xlu0 %2373, %v2334
    %v2375 = vpop.permute.xlu0 %2374
    %2378 = vset.pattern.permute.xlu0 0
    %2379 = vperm.xlu0 %2378, %v2335
    %v2380 = vpop.permute.xlu0 %2379
    %2383 = vset.pattern.permute.xlu0 0
    %2384 = vperm.xlu0 %2383, %v2336
    %v2385 = vpop.permute.xlu0 %2384
    %v2387 = vmul.f32 %v2340, %v2247
    %v2388 = vmul.f32 %v2340, %v2248
    %v2389 = vmul.f32 %v2340, %v2249
    %v2390 = vmul.f32 %v2340, %v2250
    %v2391 = vmul.f32 %v2340, %v2251
    %v2392 = vmul.f32 %v2340, %v2252
    %v2393 = vmul.f32 %v2340, %v2253
    %v2394 = vmul.f32 %v2340, %v2254
    %v2395 = vmul.f32 %v2345, %v2255
    %v2396 = vmul.f32 %v2345, %v2256
    %v2397 = vmul.f32 %v2345, %v2257
    %v2398 = vmul.f32 %v2345, %v2258
    %v2399 = vmul.f32 %v2345, %v2259
    %v2400 = vmul.f32 %v2345, %v2260
    %v2401 = vmul.f32 %v2345, %v2261
    %v2402 = vmul.f32 %v2345, %v2262
    %v2403 = vmul.f32 %v2350, %v2263
    %v2404 = vmul.f32 %v2350, %v2264
    %v2405 = vmul.f32 %v2350, %v2265
    %v2406 = vmul.f32 %v2350, %v2266
    %v2407 = vmul.f32 %v2350, %v2267
    %v2408 = vmul.f32 %v2350, %v2268
    %v2409 = vmul.f32 %v2350, %v2269
    %v2410 = vmul.f32 %v2350, %v2270
    %v2411 = vmul.f32 %v2355, %v2271
    %v2412 = vmul.f32 %v2355, %v2272
    %v2413 = vmul.f32 %v2355, %v2273
    %v2414 = vmul.f32 %v2355, %v2274
    %v2415 = vmul.f32 %v2355, %v2275
    %v2416 = vmul.f32 %v2355, %v2276
    %v2417 = vmul.f32 %v2355, %v2277
    %v2418 = vmul.f32 %v2355, %v2278
    %v2419 = vmul.f32 %v2360, %v2279
    %v2420 = vmul.f32 %v2360, %v2280
    %v2421 = vmul.f32 %v2360, %v2281
    %v2422 = vmul.f32 %v2360, %v2282
    %v2423 = vmul.f32 %v2360, %v2283
    %v2424 = vmul.f32 %v2360, %v2284
    %v2425 = vmul.f32 %v2360, %v2285
    %v2426 = vmul.f32 %v2360, %v2286
    %v2427 = vmul.f32 %v2365, %v2287
    %v2428 = vmul.f32 %v2365, %v2288
    %v2429 = vmul.f32 %v2365, %v2289
    %v2430 = vmul.f32 %v2365, %v2290
    %v2431 = vmul.f32 %v2365, %v2291
    %v2432 = vmul.f32 %v2365, %v2292
    %v2433 = vmul.f32 %v2365, %v2293
    %v2434 = vmul.f32 %v2365, %v2294
    %v2435 = vmul.f32 %v2370, %v2295
    %v2436 = vmul.f32 %v2370, %v2296
    %v2437 = vmul.f32 %v2370, %v2297
    %v2438 = vmul.f32 %v2370, %v2298
    %v2439 = vmul.f32 %v2370, %v2299
    %v2440 = vmul.f32 %v2370, %v2300
    %v2441 = vmul.f32 %v2370, %v2301
    %v2442 = vmul.f32 %v2370, %v2302
    %v2443 = vmul.f32 %v2375, %v2303
    %v2444 = vmul.f32 %v2375, %v2304
    %v2445 = vmul.f32 %v2375, %v2305
    %v2446 = vmul.f32 %v2375, %v2306
    %v2447 = vmul.f32 %v2375, %v2307
    %v2448 = vmul.f32 %v2375, %v2308
    %v2449 = vmul.f32 %v2375, %v2309
    %v2450 = vmul.f32 %v2375, %v2310
    %v2451 = vmul.f32 %v2380, %v2311
    %v2452 = vmul.f32 %v2380, %v2312
    %v2453 = vmul.f32 %v2380, %v2313
    %v2454 = vmul.f32 %v2380, %v2314
    %v2455 = vmul.f32 %v2380, %v2315
    %v2456 = vmul.f32 %v2380, %v2316
    %v2457 = vmul.f32 %v2380, %v2317
    %v2458 = vmul.f32 %v2380, %v2318
    %v2459 = vmul.f32 %v2385, %v2319
    %v2460 = vmul.f32 %v2385, %v2320
    %v2461 = vmul.f32 %v2385, %v2321
    %v2462 = vmul.f32 %v2385, %v2322
    %v2463 = vmul.f32 %v2385, %v2323
    %v2464 = vmul.f32 %v2385, %v2324
    %v2465 = vmul.f32 %v2385, %v2325
    %v2466 = vmul.f32 %v2385, %v2326
    %v2467 = vadd.f32 %v2387, %v2395
    %v2468 = vadd.f32 %v2467, %v2403
    %v2469 = vadd.f32 %v2468, %v2411
    %v2470 = vadd.f32 %v2469, %v2419
    %v2471 = vadd.f32 %v2470, %v2427
    %v2472 = vadd.f32 %v2471, %v2435
    %v2473 = vadd.f32 %v2472, %v2443
    %v2474 = vadd.f32 %v2473, %v2451
    %v2475 = vadd.f32 %v2474, %v2459
    %v2476 = vrot.slane %v2475, 4
    %v2477 = vadd.f32 %v2475, %v2476
    %v2478 = vrot.slane %v2477, 2
    %v2479 = vadd.f32 %v2477, %v2478
    %v2480 = vrot.slane %v2479, 1
    %v2481 = vadd.f32 %v2479, %v2480
    %v2482 = vadd.f32 %v2388, %v2396
    %v2483 = vadd.f32 %v2482, %v2404
    %v2484 = vadd.f32 %v2483, %v2412
    %v2485 = vadd.f32 %v2484, %v2420
    %v2486 = vadd.f32 %v2485, %v2428
    %v2487 = vadd.f32 %v2486, %v2436
    %v2488 = vadd.f32 %v2487, %v2444
    %v2489 = vadd.f32 %v2488, %v2452
    %v2490 = vadd.f32 %v2489, %v2460
    %v2491 = vrot.slane %v2490, 4
    %v2492 = vadd.f32 %v2490, %v2491
    %v2493 = vrot.slane %v2492, 2
    %v2494 = vadd.f32 %v2492, %v2493
    %v2495 = vrot.slane %v2494, 1
    %v2496 = vadd.f32 %v2494, %v2495
    %v2497 = vadd.f32 %v2389, %v2397
    %v2498 = vadd.f32 %v2497, %v2405
    %v2499 = vadd.f32 %v2498, %v2413
    %v2500 = vadd.f32 %v2499, %v2421
    %v2501 = vadd.f32 %v2500, %v2429
    %v2502 = vadd.f32 %v2501, %v2437
    %v2503 = vadd.f32 %v2502, %v2445
    %v2504 = vadd.f32 %v2503, %v2453
    %v2505 = vadd.f32 %v2504, %v2461
    %v2506 = vrot.slane %v2505, 4
    %v2507 = vadd.f32 %v2505, %v2506
    %v2508 = vrot.slane %v2507, 2
    %v2509 = vadd.f32 %v2507, %v2508
    %v2510 = vrot.slane %v2509, 1
    %v2511 = vadd.f32 %v2509, %v2510
    %v2512 = vadd.f32 %v2390, %v2398
    %v2513 = vadd.f32 %v2512, %v2406
    %v2514 = vadd.f32 %v2513, %v2414
    %v2515 = vadd.f32 %v2514, %v2422
    %v2516 = vadd.f32 %v2515, %v2430
    %v2517 = vadd.f32 %v2516, %v2438
    %v2518 = vadd.f32 %v2517, %v2446
    %v2519 = vadd.f32 %v2518, %v2454
    %v2520 = vadd.f32 %v2519, %v2462
    %v2521 = vrot.slane %v2520, 4
    %v2522 = vadd.f32 %v2520, %v2521
    %v2523 = vrot.slane %v2522, 2
    %v2524 = vadd.f32 %v2522, %v2523
    %v2525 = vrot.slane %v2524, 1
    %v2526 = vadd.f32 %v2524, %v2525
    %v2527 = vadd.f32 %v2391, %v2399
    %v2528 = vadd.f32 %v2527, %v2407
    %v2529 = vadd.f32 %v2528, %v2415
    %v2530 = vadd.f32 %v2529, %v2423
    %v2531 = vadd.f32 %v2530, %v2431
    %v2532 = vadd.f32 %v2531, %v2439
    %v2533 = vadd.f32 %v2532, %v2447
    %v2534 = vadd.f32 %v2533, %v2455
    %v2535 = vadd.f32 %v2534, %v2463
    %v2536 = vrot.slane %v2535, 4
    %v2537 = vadd.f32 %v2535, %v2536
    %v2538 = vrot.slane %v2537, 2
    %v2539 = vadd.f32 %v2537, %v2538
    %v2540 = vrot.slane %v2539, 1
    %v2541 = vadd.f32 %v2539, %v2540
    %v2542 = vadd.f32 %v2392, %v2400
    %v2543 = vadd.f32 %v2542, %v2408
    %v2544 = vadd.f32 %v2543, %v2416
    %v2545 = vadd.f32 %v2544, %v2424
    %v2546 = vadd.f32 %v2545, %v2432
    %v2547 = vadd.f32 %v2546, %v2440
    %v2548 = vadd.f32 %v2547, %v2448
    %v2549 = vadd.f32 %v2548, %v2456
    %v2550 = vadd.f32 %v2549, %v2464
    %v2551 = vrot.slane %v2550, 4
    %v2552 = vadd.f32 %v2550, %v2551
    %v2553 = vrot.slane %v2552, 2
    %v2554 = vadd.f32 %v2552, %v2553
    %v2555 = vrot.slane %v2554, 1
    %v2556 = vadd.f32 %v2554, %v2555
    %v2557 = vadd.f32 %v2393, %v2401
    %v2558 = vadd.f32 %v2557, %v2409
    %v2559 = vadd.f32 %v2558, %v2417
    %v2560 = vadd.f32 %v2559, %v2425
    %v2561 = vadd.f32 %v2560, %v2433
    %v2562 = vadd.f32 %v2561, %v2441
    %v2563 = vadd.f32 %v2562, %v2449
    %v2564 = vadd.f32 %v2563, %v2457
    %v2565 = vadd.f32 %v2564, %v2465
    %v2566 = vrot.slane %v2565, 4
    %v2567 = vadd.f32 %v2565, %v2566
    %v2568 = vrot.slane %v2567, 2
    %v2569 = vadd.f32 %v2567, %v2568
    %v2570 = vrot.slane %v2569, 1
    %v2571 = vadd.f32 %v2569, %v2570
    %v2572 = vadd.f32 %v2394, %v2402
    %v2573 = vadd.f32 %v2572, %v2410
    %v2574 = vadd.f32 %v2573, %v2418
    %v2575 = vadd.f32 %v2574, %v2426
    %v2576 = vadd.f32 %v2575, %v2434
    %v2577 = vadd.f32 %v2576, %v2442
    %v2578 = vadd.f32 %v2577, %v2450
    %v2579 = vadd.f32 %v2578, %v2458
    %v2580 = vadd.f32 %v2579, %v2466
    %v2581 = vrot.slane %v2580, 4
    %v2582 = vadd.f32 %v2580, %v2581
    %v2583 = vrot.slane %v2582, 2
    %v2584 = vadd.f32 %v2582, %v2583
    %v2585 = vrot.slane %v2584, 1
    %v2586 = vadd.f32 %v2584, %v2585
    %v2587 = vld [vmem:[#allocation2] sm:$0x1]
    %2589 = vset.pattern.permute.xlu0 0
    %2590 = vperm.xlu0 %2589, %v2587
    %v2591 = vpop.permute.xlu0 %2590
    %v2593 = vperm.slane %v2591, 0
    %v2594 = vadd.f32 %v2481, %v2593
    %v2595 = vadd.f32 %v2496, %v2593
    %v2596 = vadd.f32 %v2511, %v2593
    %v2597 = vadd.f32 %v2526, %v2593
    %v2598 = vadd.f32 %v2541, %v2593
    %v2599 = vadd.f32 %v2556, %v2593
    %v2600 = vadd.f32 %v2571, %v2593
    %v2601 = vadd.f32 %v2586, %v2593
    %v2602 = vsub.f32 0.0, %v2594
    %v2603 = vsub.f32 0.0, %v2595
    %v2604 = vsub.f32 0.0, %v2596
    %v2605 = vsub.f32 0.0, %v2597
    %v2606 = vsub.f32 0.0, %v2598
    %v2607 = vsub.f32 0.0, %v2599
    %v2608 = vsub.f32 0.0, %v2600
    %v2609 = vsub.f32 0.0, %v2601
    %v2610 = vmul.f32 %v2602, 1.442695
    %v2611 = vpow.pop %v2610
    %v2612 = vmul.f32 %v2603, 1.442695
    %v2613 = vpow.pop %v2612
    %v2614 = vmul.f32 %v2604, 1.442695
    %v2615 = vpow.pop %v2614
    %v2616 = vmul.f32 %v2605, 1.442695
    %v2617 = vpow.pop %v2616
    %v2618 = vmul.f32 %v2606, 1.442695
    %v2619 = vpow.pop %v2618
    %v2620 = vmul.f32 %v2607, 1.442695
    %v2621 = vpow.pop %v2620
    %v2622 = vmul.f32 %v2608, 1.442695
    %v2623 = vpow.pop %v2622
    %v2624 = vmul.f32 %v2609, 1.442695
    %v2625 = vpow.pop %v2624
    %v2626 = vadd.f32 %v2611, 1.0
    %v2627 = vadd.f32 %v2613, 1.0
    %v2628 = vadd.f32 %v2615, 1.0
    %v2629 = vadd.f32 %v2617, 1.0
    %v2630 = vadd.f32 %v2619, 1.0
    %v2631 = vadd.f32 %v2621, 1.0
    %v2632 = vadd.f32 %v2623, 1.0
    %v2633 = vadd.f32 %v2625, 1.0
    %v2634 = vrcp.pop %v2626
    %v2635 = vmul.f32 %v2626, %v2634
    %v2636 = vsub.f32 1.0, %v2635
    %v2637 = vmul.f32 %v2634, %v2636
    %v2638 = vadd.f32 %v2634, %v2637
    %vm2639 = vweird.f32 %v2626
    %vm2640 = vweird.f32 %v2634
    %vm2641 = vmor %vm2639, %vm2640
    %v2642 = vsel %vm2641, %v2634, %v2638
    %v2643 = vand.u32 2147483647, %v2626
    %vm2644 = vcmp.eq.f32.partialorder %v2643, 8.507059e+37
    %v2645 = vand.u32 %v2626, 2147483648
    %v2646 = vor.u32 1.1754944e-38, %v2645
    %v2647 = vsel %vm2644, %v2646, %v2642
    %v2648 = vmul.f32 1.0, %v2647
    %v2649 = vrcp.pop %v2627
    %v2650 = vmul.f32 %v2627, %v2649
    %v2651 = vsub.f32 1.0, %v2650
    %v2652 = vmul.f32 %v2649, %v2651
    %v2653 = vadd.f32 %v2649, %v2652
    %vm2654 = vweird.f32 %v2627
    %vm2655 = vweird.f32 %v2649
    %vm2656 = vmor %vm2654, %vm2655
    %v2657 = vsel %vm2656, %v2649, %v2653
    %v2658 = vand.u32 2147483647, %v2627
    %vm2659 = vcmp.eq.f32.partialorder %v2658, 8.507059e+37
    %v2660 = vand.u32 %v2627, 2147483648
    %v2661 = vor.u32 1.1754944e-38, %v2660
    %v2662 = vsel %vm2659, %v2661, %v2657
    %v2663 = vmul.f32 1.0, %v2662
    %v2664 = vrcp.pop %v2628
    %v2665 = vmul.f32 %v2628, %v2664
    %v2666 = vsub.f32 1.0, %v2665
    %v2667 = vmul.f32 %v2664, %v2666
    %v2668 = vadd.f32 %v2664, %v2667
    %vm2669 = vweird.f32 %v2628
    %vm2670 = vweird.f32 %v2664
    %vm2671 = vmor %vm2669, %vm2670
    %v2672 = vsel %vm2671, %v2664, %v2668
    %v2673 = vand.u32 2147483647, %v2628
    %vm2674 = vcmp.eq.f32.partialorder %v2673, 8.507059e+37
    %v2675 = vand.u32 %v2628, 2147483648
    %v2676 = vor.u32 1.1754944e-38, %v2675
    %v2677 = vsel %vm2674, %v2676, %v2672
    %v2678 = vmul.f32 1.0, %v2677
    %v2679 = vrcp.pop %v2629
    %v2680 = vmul.f32 %v2629, %v2679
    %v2681 = vsub.f32 1.0, %v2680
    %v2682 = vmul.f32 %v2679, %v2681
    %v2683 = vadd.f32 %v2679, %v2682
    %vm2684 = vweird.f32 %v2629
    %vm2685 = vweird.f32 %v2679
    %vm2686 = vmor %vm2684, %vm2685
    %v2687 = vsel %vm2686, %v2679, %v2683
    %v2688 = vand.u32 2147483647, %v2629
    %vm2689 = vcmp.eq.f32.partialorder %v2688, 8.507059e+37
    %v2690 = vand.u32 %v2629, 2147483648
    %v2691 = vor.u32 1.1754944e-38, %v2690
    %v2692 = vsel %vm2689, %v2691, %v2687
    %v2693 = vmul.f32 1.0, %v2692
    %v2694 = vrcp.pop %v2630
    %v2695 = vmul.f32 %v2630, %v2694
    %v2696 = vsub.f32 1.0, %v2695
    %v2697 = vmul.f32 %v2694, %v2696
    %v2698 = vadd.f32 %v2694, %v2697
    %vm2699 = vweird.f32 %v2630
    %vm2700 = vweird.f32 %v2694
    %vm2701 = vmor %vm2699, %vm2700
    %v2702 = vsel %vm2701, %v2694, %v2698
    %v2703 = vand.u32 2147483647, %v2630
    %vm2704 = vcmp.eq.f32.partialorder %v2703, 8.507059e+37
    %v2705 = vand.u32 %v2630, 2147483648
    %v2706 = vor.u32 1.1754944e-38, %v2705
    %v2707 = vsel %vm2704, %v2706, %v2702
    %v2708 = vmul.f32 1.0, %v2707
    %v2709 = vrcp.pop %v2631
    %v2710 = vmul.f32 %v2631, %v2709
    %v2711 = vsub.f32 1.0, %v2710
    %v2712 = vmul.f32 %v2709, %v2711
    %v2713 = vadd.f32 %v2709, %v2712
    %vm2714 = vweird.f32 %v2631
    %vm2715 = vweird.f32 %v2709
    %vm2716 = vmor %vm2714, %vm2715
    %v2717 = vsel %vm2716, %v2709, %v2713
    %v2718 = vand.u32 2147483647, %v2631
    %vm2719 = vcmp.eq.f32.partialorder %v2718, 8.507059e+37
    %v2720 = vand.u32 %v2631, 2147483648
    %v2721 = vor.u32 1.1754944e-38, %v2720
    %v2722 = vsel %vm2719, %v2721, %v2717
    %v2723 = vmul.f32 1.0, %v2722
    %v2724 = vrcp.pop %v2632
    %v2725 = vmul.f32 %v2632, %v2724
    %v2726 = vsub.f32 1.0, %v2725
    %v2727 = vmul.f32 %v2724, %v2726
    %v2728 = vadd.f32 %v2724, %v2727
    %vm2729 = vweird.f32 %v2632
    %vm2730 = vweird.f32 %v2724
    %vm2731 = vmor %vm2729, %vm2730
    %v2732 = vsel %vm2731, %v2724, %v2728
    %v2733 = vand.u32 2147483647, %v2632
    %vm2734 = vcmp.eq.f32.partialorder %v2733, 8.507059e+37
    %v2735 = vand.u32 %v2632, 2147483648
    %v2736 = vor.u32 1.1754944e-38, %v2735
    %v2737 = vsel %vm2734, %v2736, %v2732
    %v2738 = vmul.f32 1.0, %v2737
    %v2739 = vrcp.pop %v2633
    %v2740 = vmul.f32 %v2633, %v2739
    %v2741 = vsub.f32 1.0, %v2740
    %v2742 = vmul.f32 %v2739, %v2741
    %v2743 = vadd.f32 %v2739, %v2742
    %vm2744 = vweird.f32 %v2633
    %vm2745 = vweird.f32 %v2739
    %vm2746 = vmor %vm2744, %vm2745
    %v2747 = vsel %vm2746, %v2739, %v2743
    %v2748 = vand.u32 2147483647, %v2633
    %vm2749 = vcmp.eq.f32.partialorder %v2748, 8.507059e+37
    %v2750 = vand.u32 %v2633, 2147483648
    %v2751 = vor.u32 1.1754944e-38, %v2750
    %v2752 = vsel %vm2749, %v2751, %v2747
    %v2753 = vmul.f32 1.0, %v2752
    %v2754 = vld [vmem:[#allocation3] sm:$0x1]
    %2756 = vset.pattern.permute.xlu0 0
    %2757 = vperm.xlu0 %2756, %v2754
    %v2758 = vpop.permute.xlu0 %2757
    %v2760 = vperm.slane %v2758, 0
    %v2761 = vmul.f32 %v2760, %v2648
    %v2762 = vmul.f32 %v2760, %v2663
    %v2763 = vmul.f32 %v2760, %v2678
    %v2764 = vmul.f32 %v2760, %v2693
    %v2765 = vmul.f32 %v2760, %v2708
    %v2766 = vmul.f32 %v2760, %v2723
    %v2767 = vmul.f32 %v2760, %v2738
    %v2768 = vmul.f32 %v2760, %v2753
    %v2777 = vrot.slane %v2762, 7
    %v2778 = vrot.slane %v2763, 6
    %v2779 = vrot.slane %v2764, 5
    %v2780 = vrot.slane %v2765, 4
    %v2781 = vrot.slane %v2766, 3
    %v2782 = vrot.slane %v2767, 2
    %v2783 = vrot.slane %v2768, 1
    %vm2784 = vcmask 1040384
    %v2785 = vsel %vm2784, %v2761, %v2777
    %vm2786 = vcmask 1042434
    %v2787 = vsel %vm2786, %v2778, %v2779
    %vm2788 = vcmask 1041408
    %v2789 = vsel %vm2788, %v2785, %v2787
    %vm2790 = vcmask 1044484
    %v2791 = vsel %vm2790, %v2780, %v2781
    %vm2792 = vcmask 1046534
    %v2793 = vsel %vm2792, %v2782, %v2783
    %vm2794 = vcmask 1045508
    %v2795 = vsel %vm2794, %v2791, %v2793
    %vm2796 = vcmask 1043456
    %v2797 = vsel %vm2796, %v2789, %v2795
    %2799 = vst [vmem:[#allocation4] sm:$0xff] %v2797
    // Predicated region
    $region50: #{tpu_custom_call.1} parent=1 // pred_check
      _
    $region51: #{tpu_custom_call.1} parent=1 // pred_check_branch
      %2801 = sbr.rel (0) target = $region53
    $region52: #{tpu_custom_call.1} parent=1 // pred_region
      %2803 = vsyncadd [#allocation5], 0
      %s2805 = sshll.u32 [#allocation4], 4
      %s2806 = int_to_ptr.vmem [resolvable:$true] %s2805
      %s2807 = sshll.u32 %s12, 4
      %s2808 = int_to_ptr.hbm [resolvable:$true] %s2807
      %2810 = dma.vmem_to_hbm [thread:$0]  %s2806, 128, %s2808, [#allocation5]
    $region53: #{tpu_custom_call.1} parent=1 // pred_fallthru
      _
    // Predicated region
    $region54: #{tpu_custom_call.1} parent=1 // pred_check
      _
    $region55: #{tpu_custom_call.1} parent=1 // pred_check_branch
      %2812 = sbr.rel (0) target = $region57
    $region56: #{tpu_custom_call.1} parent=1 // pred_region
      %2814 = dma.done [#allocation5], 128
    $region57: #{tpu_custom_call.1} parent=1 // pred_fallthru
      _
    %2815 = vsyncpa [#allocation5], 1

</llo_original>
